<compile_context>
chip_gen: v7x
topology: tpu7x:2x2x1
jax: 0.10.0
libtpu: 0.0.40
codegen_flags: <defaults>
</compile_context>

<pallas_src>
import functools

import jax
import jax.numpy as jnp
from jax import lax
from jax.experimental import pallas as pl
from jax.experimental.pallas import tpu as pltpu


# ----------------------------------------------------------------------------
# Fused bidirectional GRU layer kernel (optionally with the FC head fused in).
#
# Packed gate layout along the 6H axis: [ r_f r_b | z_f z_b | n_f n_b ]
# Hidden-state layout along the 2H axis: [ h_f | h_b ]
# W_hh is block-diagonal (2H, 6H) so one matmul serves both directions.
# ----------------------------------------------------------------------------
def _bigru_layer_kernel(tmax_ref,                      # SMEM: (1,) int32, max valid length
                        x_ref, m_ref,                  # (T,B,D) f32, (T,B,1) f32
                        wih_ref, bih_ref,              # (D,6H) bf16, (1,6H) f32
                        whh_ref, bhh_ref,              # (2H,6H) bf16, (1,6H) f32
                        *rest, hidden_dim, with_fc):
    if with_fc:
        # Last layer: the sequence output is never consumed -> only logits.
        (wfc_ref, bfc_ref,                             # (2H,O) bf16, (1,O) f32
         logits_ref,                                   # (B,O)
         gi_sc, h_sc) = rest
        out_ref = None
    else:
        (out_ref,                                      # (T,B,2H)
         gi_sc, h_sc) = rest

    H = hidden_dim
    G = 6 * H

    wih = wih_ref[...]                                 # bf16, loaded once
    whh = whh_ref[...]                                 # bf16
    bih = bih_ref[...]                                 # f32
    bhh = bhh_ref[...]                                 # f32

    tmax = tmax_ref[0]                                 # longest valid length in batch

    # ---- input projection (both directions packed along 6H), hoisted out of
    # the serial recurrence and bounded at max(text_lengths): padded trailing
    # timesteps do no work at all.
    @pl.loop(0, tmax)
    def _(t):
        gi_sc[t] = jnp.dot(x_ref[t].astype(jnp.bfloat16), wih,
                           preferred_element_type=jnp.float32) + bih

    h_sc[...] = jnp.zeros_like(h_sc)
    if not with_fc:
        # pad_packed_sequence zero-pads: positions past each length stay zero.
        out_ref[...] = jnp.zeros_like(out_ref)

    # Column selectors: within each 2H-wide gate slab the first H columns are
    # the forward direction, the last H the backward direction.
    col6 = lax.broadcasted_iota(jnp.int32, (1, G), 1)
    fwd6 = (col6 % (2 * H)) < H                        # (1, 6H) bool
    col2 = lax.broadcasted_iota(jnp.int32, (1, 2 * H), 1)
    fwd2 = col2 < H                                    # (1, 2H) bool

    # ---- serial recurrence, bounded at max(text_lengths).
    @pl.loop(0, tmax)
    def _(t):
        rt = tmax - 1 - t                              # backward dir walks reversed time
        h = h_sc[...]                                  # (B, 2H) f32
        gh = jnp.dot(h.astype(jnp.bfloat16), whh,
                     preferred_element_type=jnp.float32) + bhh     # (B, 6H) f32
        # forward gate columns use gi at time t, backward columns gi at time rt
        gi = jnp.where(fwd6, gi_sc[t], gi_sc[rt])                  # (B, 6H) f32
        m_f = m_ref[t]                                             # (B, 1)
        m_b = m_ref[rt]                                            # (B, 1)
        m = jnp.where(fwd2, m_f, m_b)                              # (B, 2H)

        r = jax.nn.sigmoid(gi[:, 0:2 * H] + gh[:, 0:2 * H])
        z = jax.nn.sigmoid(gi[:, 2 * H:4 * H] + gh[:, 2 * H:4 * H])
        n = jnp.tanh(gi[:, 4 * H:6 * H] + r * gh[:, 4 * H:6 * H])
        h_new = (1.0 - z) * n + z * h
        # packed-sequence semantics: only update where this timestep is valid
        h_upd = m * h_new + (1.0 - m) * h
        h_sc[...] = h_upd

        if not with_fc:
            # Write fwd/bwd halves straight into the layer output (masked so
            # padded positions stay zero); no end-of-kernel concat pass.
            out_ref[t, :, 0:H] = m_f * h_upd[:, 0:H]
            out_ref[rt, :, H:2 * H] = m_b * h_upd[:, H:2 * H]

    if with_fc:
        # hidden = cat(hidden[-2], hidden[-1]) == h_sc; dropout is identity (eval).
        logits_ref[...] = (jnp.dot(h_sc[...].astype(jnp.bfloat16), wfc_ref[...],
                                   preferred_element_type=jnp.float32)
                           + bfc_ref[...]).astype(logits_ref.dtype)


def bigru_layer(x_tbd, mask_tb1, tmax, params, hidden_dim, w_fc=None, b_fc=None):
    """One fused bidirectional GRU layer.

    x_tbd: (T, B, D) f32 time-major.
    Returns the (T, B, 2H) sequence output, or the (B, O) logits when the FC
    head is fused in (last layer)."""
    T, B, D = x_tbd.shape
    H = hidden_dim
    G = 6 * H
    with_fc = w_fc is not None

    in_specs = [
        pl.BlockSpec((T, B, D), lambda i, tm: (0, 0, 0)),      # x (full block)
        pl.BlockSpec((T, B, 1), lambda i, tm: (0, 0, 0)),      # validity mask
        pl.BlockSpec((D, G), lambda i, tm: (0, 0)),            # packed W_ih (bf16)
        pl.BlockSpec((1, G), lambda i, tm: (0, 0)),            # packed b_ih
        pl.BlockSpec((2 * H, G), lambda i, tm: (0, 0)),        # block-diag W_hh (bf16)
        pl.BlockSpec((1, G), lambda i, tm: (0, 0)),            # packed b_hh
    ]
    args = [x_tbd, mask_tb1, params["w_ih"], params["b_ih"],
            params["w_hh"], params["b_hh"]]

    if with_fc:
        O = w_fc.shape[1]
        in_specs += [pl.BlockSpec((2 * H, O), lambda i, tm: (0, 0)),
                     pl.BlockSpec((1, O), lambda i, tm: (0, 0))]
        args += [w_fc, b_fc]
        out_shape = jax.ShapeDtypeStruct((B, O), jnp.float32)
        out_specs = pl.BlockSpec((B, O), lambda i, tm: (0, 0))
    else:
        out_shape = jax.ShapeDtypeStruct((T, B, 2 * H), jnp.float32)
        out_specs = pl.BlockSpec((T, B, 2 * H), lambda i, tm: (0, 0, 0))

    scratch = [pltpu.VMEM((T, B, G), jnp.float32),     # gi for all timesteps
               pltpu.VMEM((B, 2 * H), jnp.float32)]    # hidden state [h_f | h_b]

    kernel = functools.partial(_bigru_layer_kernel, hidden_dim=H, with_fc=with_fc)
    return pl.pallas_call(
        kernel,
        out_shape=out_shape,
        grid_spec=pltpu.PrefetchScalarGridSpec(
            num_scalar_prefetch=1,          # tmax (max valid length) lives in SMEM
            grid=(1,),
            in_specs=in_specs,
            out_specs=out_specs,
            scratch_shapes=scratch),
        compiler_params=pltpu.CompilerParams(
            dimension_semantics=("arbitrary",)),
    )(tmax, *args)


# ----------------------------------------------------------------------------
# Parameter packing: PyTorch (r,z,n) weights of both directions -> fused layout
#   gate axis (6H):  [ r_f r_b | z_f z_b | n_f n_b ]
#   W_hh block-diagonal (2H, 6H) so h = [h_f | h_b] needs a single matmul.
# Weights stored bf16 (MXU-native), biases f32.
# ----------------------------------------------------------------------------
def _pack_layer(w_ih_f, w_hh_f, b_ih_f, b_hh_f,
                w_ih_b, w_hh_b, b_ih_b, b_hh_b, H):
    def g(w):   # (3H, X) -> [W_r^T, W_z^T, W_n^T], each (X, H)
        return [w[i * H:(i + 1) * H, :].T for i in range(3)]

    def gb(b):  # (3H,) -> [b_r, b_z, b_n]
        return [b[i * H:(i + 1) * H] for i in range(3)]

    gi_f, gi_b = g(w_ih_f), g(w_ih_b)
    gh_f, gh_b = g(w_hh_f), g(w_hh_b)
    w_ih = jnp.concatenate([gi_f[0], gi_b[0], gi_f[1], gi_b[1],
                            gi_f[2], gi_b[2]], axis=1)              # (D, 6H)
    z = jnp.zeros((H, H), jnp.float32)
    top = jnp.concatenate([gh_f[0], z, gh_f[1], z, gh_f[2], z], axis=1)
    bot = jnp.concatenate([z, gh_b[0], z, gh_b[1], z, gh_b[2]], axis=1)
    w_hh = jnp.concatenate([top, bot], axis=0)                      # (2H, 6H)
    bif, bib = gb(b_ih_f), gb(b_ih_b)
    bhf, bhb = gb(b_hh_f), gb(b_hh_b)
    b_ih = jnp.concatenate([bif[0], bib[0], bif[1], bib[1],
                            bif[2], bib[2]]).reshape(1, 6 * H)
    b_hh = jnp.concatenate([bhf[0], bhb[0], bhf[1], bhb[1],
                            bhf[2], bhb[2]]).reshape(1, 6 * H)
    # TODO(synk): for larger models, pad H to a multiple of 128 so gate slabs
    # are lane-aligned and per-gate loads/stores are unmasked.
    return dict(w_ih=w_ih.astype(jnp.bfloat16),
                w_hh=w_hh.astype(jnp.bfloat16),
                b_ih=b_ih, b_hh=b_hh)


def init_params(key, input_dim, hidden_dim, output_dim, n_layers):
    """Deterministic PyTorch-style init: uniform(-1/sqrt(H), 1/sqrt(H))."""
    H = hidden_dim
    num_dirs = 2                      # bidirectional
    k = 1.0 / float(H) ** 0.5
    keys = list(jax.random.split(key, n_layers * num_dirs * 4 + 2))
    idx = 0
    layers = []
    for layer in range(n_layers):
        in_dim = input_dim if layer == 0 else H * num_dirs
        raw = []
        for _d in range(num_dirs):
            w_ih = jax.random.uniform(keys[idx], (3 * H, in_dim),
                                      minval=-k, maxval=k, dtype=jnp.float32); idx += 1
            w_hh = jax.random.uniform(keys[idx], (3 * H, H),
                                      minval=-k, maxval=k, dtype=jnp.float32); idx += 1
            b_ih = jax.random.uniform(keys[idx], (3 * H,),
                                      minval=-k, maxval=k, dtype=jnp.float32); idx += 1
            b_hh = jax.random.uniform(keys[idx], (3 * H,),
                                      minval=-k, maxval=k, dtype=jnp.float32); idx += 1
            raw.append((w_ih, w_hh, b_ih, b_hh))
        layers.append(_pack_layer(*raw[0], *raw[1], H))
    fc_in = H * num_dirs
    kf = 1.0 / float(fc_in) ** 0.5
    w_fc = jax.random.uniform(keys[idx], (output_dim, fc_in),
                              minval=-kf, maxval=kf, dtype=jnp.float32); idx += 1
    b_fc = jax.random.uniform(keys[idx], (output_dim,),
                              minval=-kf, maxval=kf, dtype=jnp.float32)
    return layers, w_fc.T.astype(jnp.bfloat16), b_fc.reshape(1, output_dim)


# ----------------------------------------------------------------------------
# Full forward (eval mode: dropout = identity).
# TODO(synk): training-mode dropout and the unidirectional (bidirectional=False)
#             path are not implemented; the demo config is bidirectional eval.
# ----------------------------------------------------------------------------
def sentiment_rnn_forward(text, text_lengths, layers, w_fc, b_fc, hidden_dim):
    # text: (B, T, D) batch_first, as in the PyTorch module.
    B, T, D = text.shape
    x = jnp.transpose(text, (1, 0, 2)).astype(jnp.float32)            # (T, B, D) once
    mask = (jnp.arange(T)[:, None] < text_lengths[None, :]).astype(jnp.float32)
    mask = mask[:, :, None]                                            # (T, B, 1)
    tmax = jnp.minimum(jnp.max(text_lengths), T).astype(jnp.int32).reshape(1)

    logits = None
    n_layers = len(layers)
    for li, p in enumerate(layers):
        if li == n_layers - 1:
            logits = bigru_layer(x, mask, tmax, p, hidden_dim,
                                 w_fc=w_fc, b_fc=b_fc)
        else:
            x = bigru_layer(x, mask, tmax, p, hidden_dim)
    return logits


forward = jax.jit(sentiment_rnn_forward, static_argnums=(5,))


if __name__ == "__main__":
    B, T = 2, 8
    input_dim, hidden_dim, output_dim = 16, 32, 2
    n_layers = 2

    key = jax.random.PRNGKey(0)
    k_text, k_params = jax.random.split(key)
    text = jax.random.normal(k_text, (B, T, input_dim), dtype=jnp.float32)
    text_lengths = jnp.array([8, 5], dtype=jnp.int32)

    layers, w_fc, b_fc = init_params(k_params, input_dim, hidden_dim,
                                     output_dim, n_layers)

    out = forward(text, text_lengths, layers, w_fc, b_fc, hidden_dim)
    out = jax.block_until_ready(out)
    assert out.shape == (B, output_dim)
    print("KERNEL_OK")
</pallas_src>

<mosaic_0001>
module attributes {stable_mosaic.version = 11 : i64} {
  func.func @_bigru_layer_kernel(%arg0: i32, %arg1: memref<1xi32, #tpu.memory_space<smem>>, %arg2: memref<8x2x16xf32, #tpu.memory_space<vmem>>, %arg3: memref<8x2x1xf32, #tpu.memory_space<vmem>>, %arg4: memref<16x192xbf16, #tpu.memory_space<vmem>>, %arg5: memref<1x192xf32, #tpu.memory_space<vmem>>, %arg6: memref<64x192xbf16, #tpu.memory_space<vmem>>, %arg7: memref<1x192xf32, #tpu.memory_space<vmem>>, %arg8: memref<8x2x64xf32, #tpu.memory_space<vmem>>, %arg9: memref<8x2x192xf32, #tpu.memory_space<vmem>>, %arg10: memref<2x64xf32, #tpu.memory_space<vmem>>) attributes {dimension_semantics = [#tpu.dimension_semantics<arbitrary>], iteration_bounds = array<i64: 1>, scalar_prefetch = 1 : i64, scratch_operands = 2 : i64, tpu.core_type = #tpu.core_type<tc>, window_params = [{pipeline_mode = #tpu.pipeline_mode<synchronous>, transform_indices = @transform_0, window_bounds = array<i64: 8, 2, 16>}, {pipeline_mode = #tpu.pipeline_mode<synchronous>, transform_indices = @transform_1, window_bounds = array<i64: 8, 2, 1>}, {pipeline_mode = #tpu.pipeline_mode<synchronous>, transform_indices = @transform_2, window_bounds = array<i64: 16, 192>}, {pipeline_mode = #tpu.pipeline_mode<synchronous>, transform_indices = @transform_3, window_bounds = array<i64: 1, 192>}, {pipeline_mode = #tpu.pipeline_mode<synchronous>, transform_indices = @transform_4, window_bounds = array<i64: 64, 192>}, {pipeline_mode = #tpu.pipeline_mode<synchronous>, transform_indices = @transform_5, window_bounds = array<i64: 1, 192>}, {pipeline_mode = #tpu.pipeline_mode<synchronous>, transform_indices = @transform_6, window_bounds = array<i64: 8, 2, 64>}]} {
    %c0 = arith.constant 0 : index
    %c0_0 = arith.constant 0 : index
    %0 = vector.load %arg4[%c0, %c0_0] : memref<16x192xbf16, #tpu.memory_space<vmem>>, vector<16x192xbf16>
    %c0_1 = arith.constant 0 : index
    %c0_2 = arith.constant 0 : index
    %1 = vector.load %arg6[%c0_1, %c0_2] : memref<64x192xbf16, #tpu.memory_space<vmem>>, vector<64x192xbf16>
    %c0_3 = arith.constant 0 : index
    %c0_4 = arith.constant 0 : index
    %2 = vector.load %arg5[%c0_3, %c0_4] : memref<1x192xf32, #tpu.memory_space<vmem>>, vector<1x192xf32>
    %c0_5 = arith.constant 0 : index
    %c0_6 = arith.constant 0 : index
    %3 = vector.load %arg7[%c0_5, %c0_6] : memref<1x192xf32, #tpu.memory_space<vmem>>, vector<1x192xf32>
    %c0_7 = arith.constant 0 : index
    %4 = memref.load %arg1[%c0_7] : memref<1xi32, #tpu.memory_space<smem>>
    %c0_i32 = arith.constant 0 : i32
    %5 = arith.subi %4, %c0_i32 : i32
    %c1_i32 = arith.constant 1 : i32
    %c1_i32_8 = arith.constant 1 : i32
    %6 = arith.subi %c1_i32, %c1_i32_8 : i32
    %7 = arith.addi %5, %6 : i32
    %c1_i32_9 = arith.constant 1 : i32
    %8 = arith.divsi %7, %c1_i32_9 : i32
    %c1_i32_10 = arith.constant 1 : i32
    %c0_i32_11 = arith.constant 0 : i32
    %c0_i32_12 = arith.constant 0 : i32
    %9 = arith.subi %8, %c0_i32_12 : i32
    %10 = arith.addi %c0_i32_12, %9 : i32
    %c1_i32_13 = arith.constant 1 : i32
    scf.for %arg11 = %c0_i32_12 to %10 step %c1_i32_13  : i32 {
      %43 = arith.muli %arg11, %c1_i32_10 : i32
      %44 = arith.addi %c0_i32_11, %43 : i32
      %45 = arith.index_cast %44 : i32 to index
      %c0_34 = arith.constant 0 : index
      %c0_35 = arith.constant 0 : index
      %46 = vector.load %arg2[%45, %c0_34, %c0_35] : memref<8x2x16xf32, #tpu.memory_space<vmem>>, vector<1x2x16xf32>
      %47 = vector.shape_cast %46 : vector<1x2x16xf32> to vector<2x16xf32>
      %48 = arith.truncf %47 : vector<2x16xf32> to vector<2x16xbf16>
      %cst_36 = arith.constant dense<0.000000e+00> : vector<2x192xf32>
      %49 = tpu.matmul %48, %0, %cst_36 {dimension_numbers = #tpu.dot_dimension_numbers<[1], [0], [0], [1], [0, 0, 1, 1], [], []>} : vector<2x16xbf16>, vector<16x192xbf16>, vector<2x192xf32> -> vector<2x192xf32>
      %50 = vector.broadcast %2 : vector<1x192xf32> to vector<2x192xf32>
      %51 = arith.addf %49, %50 : vector<2x192xf32>
      %52 = arith.index_cast %44 : i32 to index
      %c0_37 = arith.constant 0 : index
      %c0_38 = arith.constant 0 : index
      %53 = vector.load %arg9[%52, %c0_37, %c0_38] : memref<8x2x192xf32, #tpu.memory_space<vmem>>, vector<1x2x192xf32>
      %54 = vector.shape_cast %53 : vector<1x2x192xf32> to vector<2x192xf32>
      %55 = vector.shape_cast %51 : vector<2x192xf32> to vector<1x2x192xf32>
      tpu.vector_store %arg9[%52, %c0_37, %c0_38], %55 {strides = array<i32>} : memref<8x2x192xf32, #tpu.memory_space<vmem>>, vector<1x2x192xf32>,
    }
    %cst = arith.constant 0.000000e+00 : f32
    %11 = vector.broadcast %cst : f32 to vector<2x64xf32>
    %c0_14 = arith.constant 0 : index
    %c0_15 = arith.constant 0 : index
    %12 = vector.load %arg10[%c0_14, %c0_15] : memref<2x64xf32, #tpu.memory_space<vmem>>, vector<2x64xf32>
    tpu.vector_store %arg10[%c0_14, %c0_15], %11 {strides = array<i32>} : memref<2x64xf32, #tpu.memory_space<vmem>>, vector<2x64xf32>,
    %cst_16 = arith.constant 0.000000e+00 : f32
    %13 = vector.broadcast %cst_16 : f32 to vector<8x2x64xf32>
    %c0_17 = arith.constant 0 : index
    %c0_18 = arith.constant 0 : index
    %c0_19 = arith.constant 0 : index
    %14 = vector.load %arg8[%c0_17, %c0_18, %c0_19] : memref<8x2x64xf32, #tpu.memory_space<vmem>>, vector<8x2x64xf32>
    tpu.vector_store %arg8[%c0_17, %c0_18, %c0_19], %13 {strides = array<i32>} : memref<8x2x64xf32, #tpu.memory_space<vmem>>, vector<8x2x64xf32>,
    %15 = tpu.iota {dimensions = array<i32: 1>} : vector<1x192xi32>
    %c64_i32 = arith.constant 64 : i32
    %c0_i32_20 = arith.constant 0 : i32
    %16 = arith.cmpi eq, %c64_i32, %c0_i32_20 : i32
    %c1_i32_21 = arith.constant 1 : i32
    %17 = arith.select %16, %c1_i32_21, %c64_i32 : i32
    %18 = vector.broadcast %17 : i32 to vector<1x192xi32>
    %19 = arith.remsi %15, %18 : vector<1x192xi32>
    %c0_i32_22 = arith.constant 0 : i32
    %20 = vector.broadcast %c0_i32_22 : i32 to vector<1x192xi32>
    %21 = arith.cmpi ne, %19, %20 : vector<1x192xi32>
    %c0_i32_23 = arith.constant 0 : i32
    %22 = vector.broadcast %c0_i32_23 : i32 to vector<1x192xi32>
    %23 = arith.cmpi slt, %19, %22 : vector<1x192xi32>
    %c0_i32_24 = arith.constant 0 : i32
    %24 = arith.cmpi slt, %17, %c0_i32_24 : i32
    %25 = vector.broadcast %24 : i1 to vector<1x192xi1>
    %26 = vector.broadcast %25 : vector<1x192xi1> to vector<1x192xi1>
    %27 = arith.xori %23, %26 : vector<1x192xi1>
    %28 = arith.andi %27, %21 : vector<1x192xi1>
    %29 = vector.broadcast %17 : i32 to vector<1x192xi32>
    %30 = arith.addi %19, %29 : vector<1x192xi32>
    %31 = arith.select %28, %30, %19 : vector<1x192xi1>, vector<1x192xi32>
    %c32_i32 = arith.constant 32 : i32
    %32 = vector.broadcast %c32_i32 : i32 to vector<1x192xi32>
    %33 = arith.cmpi slt, %31, %32 : vector<1x192xi32>
    %34 = tpu.iota {dimensions = array<i32: 1>} : vector<1x64xi32>
    %c32_i32_25 = arith.constant 32 : i32
    %35 = vector.broadcast %c32_i32_25 : i32 to vector<1x64xi32>
    %36 = arith.cmpi slt, %34, %35 : vector<1x64xi32>
    %c0_i32_26 = arith.constant 0 : i32
    %37 = arith.subi %4, %c0_i32_26 : i32
    %c1_i32_27 = arith.constant 1 : i32
    %c1_i32_28 = arith.constant 1 : i32
    %38 = arith.subi %c1_i32_27, %c1_i32_28 : i32
    %39 = arith.addi %37, %38 : i32
    %c1_i32_29 = arith.constant 1 : i32
    %40 = arith.divsi %39, %c1_i32_29 : i32
    %c1_i32_30 = arith.constant 1 : i32
    %c0_i32_31 = arith.constant 0 : i32
    %c0_i32_32 = arith.constant 0 : i32
    %41 = arith.subi %40, %c0_i32_32 : i32
    %42 = arith.addi %c0_i32_32, %41 : i32
    %c1_i32_33 = arith.constant 1 : i32
    scf.for %arg11 = %c0_i32_32 to %42 step %c1_i32_33  : i32 {
      %43 = arith.muli %arg11, %c1_i32_30 : i32
      %44 = arith.addi %c0_i32_31, %43 : i32
      %c1_i32_34 = arith.constant 1 : i32
      %45 = arith.subi %4, %c1_i32_34 : i32
      %46 = arith.subi %45, %44 : i32
      %c0_35 = arith.constant 0 : index
      %c0_36 = arith.constant 0 : index
      %47 = vector.load %arg10[%c0_35, %c0_36] : memref<2x64xf32, #tpu.memory_space<vmem>>, vector<2x64xf32>
      %48 = arith.truncf %47 : vector<2x64xf32> to vector<2x64xbf16>
      %cst_37 = arith.constant dense<0.000000e+00> : vector<2x192xf32>
      %49 = tpu.matmul %48, %1, %cst_37 {dimension_numbers = #tpu.dot_dimension_numbers<[1], [0], [0], [1], [0, 0, 1, 1], [], []>} : vector<2x64xbf16>, vector<64x192xbf16>, vector<2x192xf32> -> vector<2x192xf32>
      %50 = vector.broadcast %3 : vector<1x192xf32> to vector<2x192xf32>
      %51 = arith.addf %49, %50 : vector<2x192xf32>
      %52 = arith.index_cast %44 : i32 to index
      %c0_38 = arith.constant 0 : index
      %c0_39 = arith.constant 0 : index
      %53 = vector.load %arg9[%52, %c0_38, %c0_39] : memref<8x2x192xf32, #tpu.memory_space<vmem>>, vector<1x2x192xf32>
      %54 = vector.shape_cast %53 : vector<1x2x192xf32> to vector<2x192xf32>
      %55 = arith.index_cast %46 : i32 to index
      %c0_40 = arith.constant 0 : index
      %c0_41 = arith.constant 0 : index
      %56 = vector.load %arg9[%55, %c0_40, %c0_41] : memref<8x2x192xf32, #tpu.memory_space<vmem>>, vector<1x2x192xf32>
      %57 = vector.shape_cast %56 : vector<1x2x192xf32> to vector<2x192xf32>
      %58 = vector.shape_cast %33 : vector<1x192xi1> to vector<1x192xi1>
      %59 = vector.broadcast %58 : vector<1x192xi1> to vector<2x192xi1>
      %60 = arith.select %59, %54, %57 : vector<2x192xi1>, vector<2x192xf32>
      %61 = arith.index_cast %44 : i32 to index
      %c0_42 = arith.constant 0 : index
      %c0_43 = arith.constant 0 : index
      %62 = vector.load %arg3[%61, %c0_42, %c0_43] : memref<8x2x1xf32, #tpu.memory_space<vmem>>, vector<1x2x1xf32>
      %63 = vector.shape_cast %62 : vector<1x2x1xf32> to vector<2x1xf32>
      %64 = arith.index_cast %46 : i32 to index
      %c0_44 = arith.constant 0 : index
      %c0_45 = arith.constant 0 : index
      %65 = vector.load %arg3[%64, %c0_44, %c0_45] : memref<8x2x1xf32, #tpu.memory_space<vmem>>, vector<1x2x1xf32>
      %66 = vector.shape_cast %65 : vector<1x2x1xf32> to vector<2x1xf32>
      %67 = vector.shape_cast %36 : vector<1x64xi1> to vector<1x64xi1>
      %68 = vector.broadcast %67 : vector<1x64xi1> to vector<2x64xi1>
      %69 = vector.shape_cast %63 : vector<2x1xf32> to vector<2x1xf32>
      %70 = vector.broadcast %69 : vector<2x1xf32> to vector<2x64xf32>
      %71 = vector.shape_cast %66 : vector<2x1xf32> to vector<2x1xf32>
      %72 = vector.broadcast %71 : vector<2x1xf32> to vector<2x64xf32>
      %73 = arith.select %68, %70, %72 : vector<2x64xi1>, vector<2x64xf32>
      %74 = vector.extract_strided_slice %60 {offsets = [0, 0], sizes = [2, 64], strides = [1, 1]} : vector<2x192xf32> to vector<2x64xf32>
      %75 = vector.extract_strided_slice %51 {offsets = [0, 0], sizes = [2, 64], strides = [1, 1]} : vector<2x192xf32> to vector<2x64xf32>
      %76 = arith.addf %74, %75 : vector<2x64xf32>
      %77 = arith.negf %76 : vector<2x64xf32>
      %78 = math.exp %77 : vector<2x64xf32>
      %cst_46 = arith.constant 1.000000e+00 : f32
      %79 = vector.broadcast %cst_46 : f32 to vector<2x64xf32>
      %80 = arith.addf %79, %78 : vector<2x64xf32>
      %81 = arith.divf %79, %80 : vector<2x64xf32>
      %82 = vector.extract_strided_slice %60 {offsets = [0, 64], sizes = [2, 64], strides = [1, 1]} : vector<2x192xf32> to vector<2x64xf32>
      %83 = vector.extract_strided_slice %51 {offsets = [0, 64], sizes = [2, 64], strides = [1, 1]} : vector<2x192xf32> to vector<2x64xf32>
      %84 = arith.addf %82, %83 : vector<2x64xf32>
      %85 = arith.negf %84 : vector<2x64xf32>
      %86 = math.exp %85 : vector<2x64xf32>
      %cst_47 = arith.constant 1.000000e+00 : f32
      %87 = vector.broadcast %cst_47 : f32 to vector<2x64xf32>
      %88 = arith.addf %87, %86 : vector<2x64xf32>
      %89 = arith.divf %87, %88 : vector<2x64xf32>
      %90 = vector.extract_strided_slice %60 {offsets = [0, 128], sizes = [2, 64], strides = [1, 1]} : vector<2x192xf32> to vector<2x64xf32>
      %91 = vector.extract_strided_slice %51 {offsets = [0, 128], sizes = [2, 64], strides = [1, 1]} : vector<2x192xf32> to vector<2x64xf32>
      %92 = arith.mulf %81, %91 : vector<2x64xf32>
      %93 = arith.addf %90, %92 : vector<2x64xf32>
      %94 = math.tanh %93 : vector<2x64xf32>
      %cst_48 = arith.constant 1.000000e+00 : f32
      %95 = vector.broadcast %cst_48 : f32 to vector<2x64xf32>
      %96 = arith.subf %95, %89 : vector<2x64xf32>
      %97 = arith.mulf %96, %94 : vector<2x64xf32>
      %98 = arith.mulf %89, %47 : vector<2x64xf32>
      %99 = arith.addf %97, %98 : vector<2x64xf32>
      %100 = arith.mulf %73, %99 : vector<2x64xf32>
      %cst_49 = arith.constant 1.000000e+00 : f32
      %101 = vector.broadcast %cst_49 : f32 to vector<2x64xf32>
      %102 = arith.subf %101, %73 : vector<2x64xf32>
      %103 = arith.mulf %102, %47 : vector<2x64xf32>
      %104 = arith.addf %100, %103 : vector<2x64xf32>
      %c0_50 = arith.constant 0 : index
      %c0_51 = arith.constant 0 : index
      %105 = vector.load %arg10[%c0_50, %c0_51] : memref<2x64xf32, #tpu.memory_space<vmem>>, vector<2x64xf32>
      tpu.vector_store %arg10[%c0_50, %c0_51], %104 {strides = array<i32>} : memref<2x64xf32, #tpu.memory_space<vmem>>, vector<2x64xf32>,
      %106 = vector.extract_strided_slice %104 {offsets = [0, 0], sizes = [2, 32], strides = [1, 1]} : vector<2x64xf32> to vector<2x32xf32>
      %107 = vector.broadcast %63 : vector<2x1xf32> to vector<2x32xf32>
      %108 = arith.mulf %107, %106 : vector<2x32xf32>
      %109 = arith.index_cast %44 : i32 to index
      %c0_52 = arith.constant 0 : index
      %c0_53 = arith.constant 0 : index
      %110 = vector.load %arg8[%109, %c0_52, %c0_53] : memref<8x2x64xf32, #tpu.memory_space<vmem>>, vector<1x2x32xf32>
      %111 = vector.shape_cast %110 : vector<1x2x32xf32> to vector<2x32xf32>
      %112 = vector.shape_cast %108 : vector<2x32xf32> to vector<1x2x32xf32>
      tpu.vector_store %arg8[%109, %c0_52, %c0_53], %112 {strides = array<i32>} : memref<8x2x64xf32, #tpu.memory_space<vmem>>, vector<1x2x32xf32>,
      %113 = vector.extract_strided_slice %104 {offsets = [0, 32], sizes = [2, 32], strides = [1, 1]} : vector<2x64xf32> to vector<2x32xf32>
      %114 = vector.broadcast %66 : vector<2x1xf32> to vector<2x32xf32>
      %115 = arith.mulf %114, %113 : vector<2x32xf32>
      %116 = arith.index_cast %46 : i32 to index
      %c0_54 = arith.constant 0 : index
      %c32 = arith.constant 32 : index
      %117 = vector.load %arg8[%116, %c0_54, %c32] : memref<8x2x64xf32, #tpu.memory_space<vmem>>, vector<1x2x32xf32>
      %118 = vector.shape_cast %117 : vector<1x2x32xf32> to vector<2x32xf32>
      %119 = vector.shape_cast %115 : vector<2x32xf32> to vector<1x2x32xf32>
      tpu.vector_store %arg8[%116, %c0_54, %c32], %119 {strides = array<i32>} : memref<8x2x64xf32, #tpu.memory_space<vmem>>, vector<1x2x32xf32>,
    }
    return
  }
  func.func @transform_0(%arg0: i32, %arg1: memref<1xi32, #tpu.memory_space<smem>>) -> (i32, i32, i32) {
    %c0_i32 = arith.constant 0 : i32
    %c0_i32_0 = arith.constant 0 : i32
    %c0_i32_1 = arith.constant 0 : i32
    %c0_i32_2 = arith.constant 0 : i32
    return %c0_i32, %c0_i32_0, %c0_i32_1 : i32, i32, i32
  }
  func.func @transform_1(%arg0: i32, %arg1: memref<1xi32, #tpu.memory_space<smem>>) -> (i32, i32, i32) {
    %c0_i32 = arith.constant 0 : i32
    %c0_i32_0 = arith.constant 0 : i32
    %c0_i32_1 = arith.constant 0 : i32
    %c0_i32_2 = arith.constant 0 : i32
    return %c0_i32, %c0_i32_0, %c0_i32_1 : i32, i32, i32
  }
  func.func @transform_2(%arg0: i32, %arg1: memref<1xi32, #tpu.memory_space<smem>>) -> (i32, i32) {
    %c0_i32 = arith.constant 0 : i32
    %c0_i32_0 = arith.constant 0 : i32
    %c0_i32_1 = arith.constant 0 : i32
    return %c0_i32, %c0_i32_0 : i32, i32
  }
  func.func @transform_3(%arg0: i32, %arg1: memref<1xi32, #tpu.memory_space<smem>>) -> (i32, i32) {
    %c0_i32 = arith.constant 0 : i32
    %c0_i32_0 = arith.constant 0 : i32
    %c0_i32_1 = arith.constant 0 : i32
    return %c0_i32, %c0_i32_0 : i32, i32
  }
  func.func @transform_4(%arg0: i32, %arg1: memref<1xi32, #tpu.memory_space<smem>>) -> (i32, i32) {
    %c0_i32 = arith.constant 0 : i32
    %c0_i32_0 = arith.constant 0 : i32
    %c0_i32_1 = arith.constant 0 : i32
    return %c0_i32, %c0_i32_0 : i32, i32
  }
  func.func @transform_5(%arg0: i32, %arg1: memref<1xi32, #tpu.memory_space<smem>>) -> (i32, i32) {
    %c0_i32 = arith.constant 0 : i32
    %c0_i32_0 = arith.constant 0 : i32
    %c0_i32_1 = arith.constant 0 : i32
    return %c0_i32, %c0_i32_0 : i32, i32
  }
  func.func @transform_6(%arg0: i32, %arg1: memref<1xi32, #tpu.memory_space<smem>>) -> (i32, i32, i32) {
    %c0_i32 = arith.constant 0 : i32
    %c0_i32_0 = arith.constant 0 : i32
    %c0_i32_1 = arith.constant 0 : i32
    %c0_i32_2 = arith.constant 0 : i32
    return %c0_i32, %c0_i32_0, %c0_i32_1 : i32, i32, i32
  }
}

module attributes {stable_mosaic.version = 11 : i64} {
  func.func @_bigru_layer_kernel(%arg0: i32, %arg1: memref<1xi32, #tpu.memory_space<smem>>, %arg2: memref<8x2x64xf32, #tpu.memory_space<vmem>>, %arg3: memref<8x2x1xf32, #tpu.memory_space<vmem>>, %arg4: memref<64x192xbf16, #tpu.memory_space<vmem>>, %arg5: memref<1x192xf32, #tpu.memory_space<vmem>>, %arg6: memref<64x192xbf16, #tpu.memory_space<vmem>>, %arg7: memref<1x192xf32, #tpu.memory_space<vmem>>, %arg8: memref<64x2xbf16, #tpu.memory_space<vmem>>, %arg9: memref<1x2xf32, #tpu.memory_space<vmem>>, %arg10: memref<2x2xf32, #tpu.memory_space<vmem>>, %arg11: memref<8x2x192xf32, #tpu.memory_space<vmem>>, %arg12: memref<2x64xf32, #tpu.memory_space<vmem>>) attributes {dimension_semantics = [#tpu.dimension_semantics<arbitrary>], iteration_bounds = array<i64: 1>, scalar_prefetch = 1 : i64, scratch_operands = 2 : i64, tpu.core_type = #tpu.core_type<tc>, window_params = [{pipeline_mode = #tpu.pipeline_mode<synchronous>, transform_indices = @transform_0, window_bounds = array<i64: 8, 2, 64>}, {pipeline_mode = #tpu.pipeline_mode<synchronous>, transform_indices = @transform_1, window_bounds = array<i64: 8, 2, 1>}, {pipeline_mode = #tpu.pipeline_mode<synchronous>, transform_indices = @transform_2, window_bounds = array<i64: 64, 192>}, {pipeline_mode = #tpu.pipeline_mode<synchronous>, transform_indices = @transform_3, window_bounds = array<i64: 1, 192>}, {pipeline_mode = #tpu.pipeline_mode<synchronous>, transform_indices = @transform_4, window_bounds = array<i64: 64, 192>}, {pipeline_mode = #tpu.pipeline_mode<synchronous>, transform_indices = @transform_5, window_bounds = array<i64: 1, 192>}, {pipeline_mode = #tpu.pipeline_mode<synchronous>, transform_indices = @transform_6, window_bounds = array<i64: 64, 2>}, {pipeline_mode = #tpu.pipeline_mode<synchronous>, transform_indices = @transform_7, window_bounds = array<i64: 1, 2>}, {pipeline_mode = #tpu.pipeline_mode<synchronous>, transform_indices = @transform_8, window_bounds = array<i64: 2, 2>}]} {
    %c0 = arith.constant 0 : index
    %c0_0 = arith.constant 0 : index
    %0 = vector.load %arg4[%c0, %c0_0] : memref<64x192xbf16, #tpu.memory_space<vmem>>, vector<64x192xbf16>
    %c0_1 = arith.constant 0 : index
    %c0_2 = arith.constant 0 : index
    %1 = vector.load %arg6[%c0_1, %c0_2] : memref<64x192xbf16, #tpu.memory_space<vmem>>, vector<64x192xbf16>
    %c0_3 = arith.constant 0 : index
    %c0_4 = arith.constant 0 : index
    %2 = vector.load %arg5[%c0_3, %c0_4] : memref<1x192xf32, #tpu.memory_space<vmem>>, vector<1x192xf32>
    %c0_5 = arith.constant 0 : index
    %c0_6 = arith.constant 0 : index
    %3 = vector.load %arg7[%c0_5, %c0_6] : memref<1x192xf32, #tpu.memory_space<vmem>>, vector<1x192xf32>
    %c0_7 = arith.constant 0 : index
    %4 = memref.load %arg1[%c0_7] : memref<1xi32, #tpu.memory_space<smem>>
    %c0_i32 = arith.constant 0 : i32
    %5 = arith.subi %4, %c0_i32 : i32
    %c1_i32 = arith.constant 1 : i32
    %c1_i32_8 = arith.constant 1 : i32
    %6 = arith.subi %c1_i32, %c1_i32_8 : i32
    %7 = arith.addi %5, %6 : i32
    %c1_i32_9 = arith.constant 1 : i32
    %8 = arith.divsi %7, %c1_i32_9 : i32
    %c1_i32_10 = arith.constant 1 : i32
    %c0_i32_11 = arith.constant 0 : i32
    %c0_i32_12 = arith.constant 0 : i32
    %9 = arith.subi %8, %c0_i32_12 : i32
    %10 = arith.addi %c0_i32_12, %9 : i32
    %c1_i32_13 = arith.constant 1 : i32
    scf.for %arg13 = %c0_i32_12 to %10 step %c1_i32_13  : i32 {
      %49 = arith.muli %arg13, %c1_i32_10 : i32
      %50 = arith.addi %c0_i32_11, %49 : i32
      %51 = arith.index_cast %50 : i32 to index
      %c0_39 = arith.constant 0 : index
      %c0_40 = arith.constant 0 : index
      %52 = vector.load %arg2[%51, %c0_39, %c0_40] : memref<8x2x64xf32, #tpu.memory_space<vmem>>, vector<1x2x64xf32>
      %53 = vector.shape_cast %52 : vector<1x2x64xf32> to vector<2x64xf32>
      %54 = arith.truncf %53 : vector<2x64xf32> to vector<2x64xbf16>
      %cst_41 = arith.constant dense<0.000000e+00> : vector<2x192xf32>
      %55 = tpu.matmul %54, %0, %cst_41 {dimension_numbers = #tpu.dot_dimension_numbers<[1], [0], [0], [1], [0, 0, 1, 1], [], []>} : vector<2x64xbf16>, vector<64x192xbf16>, vector<2x192xf32> -> vector<2x192xf32>
      %56 = vector.broadcast %2 : vector<1x192xf32> to vector<2x192xf32>
      %57 = arith.addf %55, %56 : vector<2x192xf32>
      %58 = arith.index_cast %50 : i32 to index
      %c0_42 = arith.constant 0 : index
      %c0_43 = arith.constant 0 : index
      %59 = vector.load %arg11[%58, %c0_42, %c0_43] : memref<8x2x192xf32, #tpu.memory_space<vmem>>, vector<1x2x192xf32>
      %60 = vector.shape_cast %59 : vector<1x2x192xf32> to vector<2x192xf32>
      %61 = vector.shape_cast %57 : vector<2x192xf32> to vector<1x2x192xf32>
      tpu.vector_store %arg11[%58, %c0_42, %c0_43], %61 {strides = array<i32>} : memref<8x2x192xf32, #tpu.memory_space<vmem>>, vector<1x2x192xf32>,
    }
    %cst = arith.constant 0.000000e+00 : f32
    %11 = vector.broadcast %cst : f32 to vector<2x64xf32>
    %c0_14 = arith.constant 0 : index
    %c0_15 = arith.constant 0 : index
    %12 = vector.load %arg12[%c0_14, %c0_15] : memref<2x64xf32, #tpu.memory_space<vmem>>, vector<2x64xf32>
    tpu.vector_store %arg12[%c0_14, %c0_15], %11 {strides = array<i32>} : memref<2x64xf32, #tpu.memory_space<vmem>>, vector<2x64xf32>,
    %13 = tpu.iota {dimensions = array<i32: 1>} : vector<1x192xi32>
    %c64_i32 = arith.constant 64 : i32
    %c0_i32_16 = arith.constant 0 : i32
    %14 = arith.cmpi eq, %c64_i32, %c0_i32_16 : i32
    %c1_i32_17 = arith.constant 1 : i32
    %15 = arith.select %14, %c1_i32_17, %c64_i32 : i32
    %16 = vector.broadcast %15 : i32 to vector<1x192xi32>
    %17 = arith.remsi %13, %16 : vector<1x192xi32>
    %c0_i32_18 = arith.constant 0 : i32
    %18 = vector.broadcast %c0_i32_18 : i32 to vector<1x192xi32>
    %19 = arith.cmpi ne, %17, %18 : vector<1x192xi32>
    %c0_i32_19 = arith.constant 0 : i32
    %20 = vector.broadcast %c0_i32_19 : i32 to vector<1x192xi32>
    %21 = arith.cmpi slt, %17, %20 : vector<1x192xi32>
    %c0_i32_20 = arith.constant 0 : i32
    %22 = arith.cmpi slt, %15, %c0_i32_20 : i32
    %23 = vector.broadcast %22 : i1 to vector<1x192xi1>
    %24 = vector.broadcast %23 : vector<1x192xi1> to vector<1x192xi1>
    %25 = arith.xori %21, %24 : vector<1x192xi1>
    %26 = arith.andi %25, %19 : vector<1x192xi1>
    %27 = vector.broadcast %15 : i32 to vector<1x192xi32>
    %28 = arith.addi %17, %27 : vector<1x192xi32>
    %29 = arith.select %26, %28, %17 : vector<1x192xi1>, vector<1x192xi32>
    %c32_i32 = arith.constant 32 : i32
    %30 = vector.broadcast %c32_i32 : i32 to vector<1x192xi32>
    %31 = arith.cmpi slt, %29, %30 : vector<1x192xi32>
    %32 = tpu.iota {dimensions = array<i32: 1>} : vector<1x64xi32>
    %c32_i32_21 = arith.constant 32 : i32
    %33 = vector.broadcast %c32_i32_21 : i32 to vector<1x64xi32>
    %34 = arith.cmpi slt, %32, %33 : vector<1x64xi32>
    %c0_i32_22 = arith.constant 0 : i32
    %35 = arith.subi %4, %c0_i32_22 : i32
    %c1_i32_23 = arith.constant 1 : i32
    %c1_i32_24 = arith.constant 1 : i32
    %36 = arith.subi %c1_i32_23, %c1_i32_24 : i32
    %37 = arith.addi %35, %36 : i32
    %c1_i32_25 = arith.constant 1 : i32
    %38 = arith.divsi %37, %c1_i32_25 : i32
    %c1_i32_26 = arith.constant 1 : i32
    %c0_i32_27 = arith.constant 0 : i32
    %c0_i32_28 = arith.constant 0 : i32
    %39 = arith.subi %38, %c0_i32_28 : i32
    %40 = arith.addi %c0_i32_28, %39 : i32
    %c1_i32_29 = arith.constant 1 : i32
    scf.for %arg13 = %c0_i32_28 to %40 step %c1_i32_29  : i32 {
      %49 = arith.muli %arg13, %c1_i32_26 : i32
      %50 = arith.addi %c0_i32_27, %49 : i32
      %c1_i32_39 = arith.constant 1 : i32
      %51 = arith.subi %4, %c1_i32_39 : i32
      %52 = arith.subi %51, %50 : i32
      %c0_40 = arith.constant 0 : index
      %c0_41 = arith.constant 0 : index
      %53 = vector.load %arg12[%c0_40, %c0_41] : memref<2x64xf32, #tpu.memory_space<vmem>>, vector<2x64xf32>
      %54 = arith.truncf %53 : vector<2x64xf32> to vector<2x64xbf16>
      %cst_42 = arith.constant dense<0.000000e+00> : vector<2x192xf32>
      %55 = tpu.matmul %54, %1, %cst_42 {dimension_numbers = #tpu.dot_dimension_numbers<[1], [0], [0], [1], [0, 0, 1, 1], [], []>} : vector<2x64xbf16>, vector<64x192xbf16>, vector<2x192xf32> -> vector<2x192xf32>
      %56 = vector.broadcast %3 : vector<1x192xf32> to vector<2x192xf32>
      %57 = arith.addf %55, %56 : vector<2x192xf32>
      %58 = arith.index_cast %50 : i32 to index
      %c0_43 = arith.constant 0 : index
      %c0_44 = arith.constant 0 : index
      %59 = vector.load %arg11[%58, %c0_43, %c0_44] : memref<8x2x192xf32, #tpu.memory_space<vmem>>, vector<1x2x192xf32>
      %60 = vector.shape_cast %59 : vector<1x2x192xf32> to vector<2x192xf32>
      %61 = arith.index_cast %52 : i32 to index
      %c0_45 = arith.constant 0 : index
      %c0_46 = arith.constant 0 : index
      %62 = vector.load %arg11[%61, %c0_45, %c0_46] : memref<8x2x192xf32, #tpu.memory_space<vmem>>, vector<1x2x192xf32>
      %63 = vector.shape_cast %62 : vector<1x2x192xf32> to vector<2x192xf32>
      %64 = vector.shape_cast %31 : vector<1x192xi1> to vector<1x192xi1>
      %65 = vector.broadcast %64 : vector<1x192xi1> to vector<2x192xi1>
      %66 = arith.select %65, %60, %63 : vector<2x192xi1>, vector<2x192xf32>
      %67 = arith.index_cast %50 : i32 to index
      %c0_47 = arith.constant 0 : index
      %c0_48 = arith.constant 0 : index
      %68 = vector.load %arg3[%67, %c0_47, %c0_48] : memref<8x2x1xf32, #tpu.memory_space<vmem>>, vector<1x2x1xf32>
      %69 = vector.shape_cast %68 : vector<1x2x1xf32> to vector<2x1xf32>
      %70 = arith.index_cast %52 : i32 to index
      %c0_49 = arith.constant 0 : index
      %c0_50 = arith.constant 0 : index
      %71 = vector.load %arg3[%70, %c0_49, %c0_50] : memref<8x2x1xf32, #tpu.memory_space<vmem>>, vector<1x2x1xf32>
      %72 = vector.shape_cast %71 : vector<1x2x1xf32> to vector<2x1xf32>
      %73 = vector.shape_cast %34 : vector<1x64xi1> to vector<1x64xi1>
      %74 = vector.broadcast %73 : vector<1x64xi1> to vector<2x64xi1>
      %75 = vector.shape_cast %69 : vector<2x1xf32> to vector<2x1xf32>
      %76 = vector.broadcast %75 : vector<2x1xf32> to vector<2x64xf32>
      %77 = vector.shape_cast %72 : vector<2x1xf32> to vector<2x1xf32>
      %78 = vector.broadcast %77 : vector<2x1xf32> to vector<2x64xf32>
      %79 = arith.select %74, %76, %78 : vector<2x64xi1>, vector<2x64xf32>
      %80 = vector.extract_strided_slice %66 {offsets = [0, 0], sizes = [2, 64], strides = [1, 1]} : vector<2x192xf32> to vector<2x64xf32>
      %81 = vector.extract_strided_slice %57 {offsets = [0, 0], sizes = [2, 64], strides = [1, 1]} : vector<2x192xf32> to vector<2x64xf32>
      %82 = arith.addf %80, %81 : vector<2x64xf32>
      %83 = arith.negf %82 : vector<2x64xf32>
      %84 = math.exp %83 : vector<2x64xf32>
      %cst_51 = arith.constant 1.000000e+00 : f32
      %85 = vector.broadcast %cst_51 : f32 to vector<2x64xf32>
      %86 = arith.addf %85, %84 : vector<2x64xf32>
      %87 = arith.divf %85, %86 : vector<2x64xf32>
      %88 = vector.extract_strided_slice %66 {offsets = [0, 64], sizes = [2, 64], strides = [1, 1]} : vector<2x192xf32> to vector<2x64xf32>
      %89 = vector.extract_strided_slice %57 {offsets = [0, 64], sizes = [2, 64], strides = [1, 1]} : vector<2x192xf32> to vector<2x64xf32>
      %90 = arith.addf %88, %89 : vector<2x64xf32>
      %91 = arith.negf %90 : vector<2x64xf32>
      %92 = math.exp %91 : vector<2x64xf32>
      %cst_52 = arith.constant 1.000000e+00 : f32
      %93 = vector.broadcast %cst_52 : f32 to vector<2x64xf32>
      %94 = arith.addf %93, %92 : vector<2x64xf32>
      %95 = arith.divf %93, %94 : vector<2x64xf32>
      %96 = vector.extract_strided_slice %66 {offsets = [0, 128], sizes = [2, 64], strides = [1, 1]} : vector<2x192xf32> to vector<2x64xf32>
      %97 = vector.extract_strided_slice %57 {offsets = [0, 128], sizes = [2, 64], strides = [1, 1]} : vector<2x192xf32> to vector<2x64xf32>
      %98 = arith.mulf %87, %97 : vector<2x64xf32>
      %99 = arith.addf %96, %98 : vector<2x64xf32>
      %100 = math.tanh %99 : vector<2x64xf32>
      %cst_53 = arith.constant 1.000000e+00 : f32
      %101 = vector.broadcast %cst_53 : f32 to vector<2x64xf32>
      %102 = arith.subf %101, %95 : vector<2x64xf32>
      %103 = arith.mulf %102, %100 : vector<2x64xf32>
      %104 = arith.mulf %95, %53 : vector<2x64xf32>
      %105 = arith.addf %103, %104 : vector<2x64xf32>
      %106 = arith.mulf %79, %105 : vector<2x64xf32>
      %cst_54 = arith.constant 1.000000e+00 : f32
      %107 = vector.broadcast %cst_54 : f32 to vector<2x64xf32>
      %108 = arith.subf %107, %79 : vector<2x64xf32>
      %109 = arith.mulf %108, %53 : vector<2x64xf32>
      %110 = arith.addf %106, %109 : vector<2x64xf32>
      %c0_55 = arith.constant 0 : index
      %c0_56 = arith.constant 0 : index
      %111 = vector.load %arg12[%c0_55, %c0_56] : memref<2x64xf32, #tpu.memory_space<vmem>>, vector<2x64xf32>
      tpu.vector_store %arg12[%c0_55, %c0_56], %110 {strides = array<i32>} : memref<2x64xf32, #tpu.memory_space<vmem>>, vector<2x64xf32>,
    }
    %c0_30 = arith.constant 0 : index
    %c0_31 = arith.constant 0 : index
    %41 = vector.load %arg12[%c0_30, %c0_31] : memref<2x64xf32, #tpu.memory_space<vmem>>, vector<2x64xf32>
    %42 = arith.truncf %41 : vector<2x64xf32> to vector<2x64xbf16>
    %c0_32 = arith.constant 0 : index
    %c0_33 = arith.constant 0 : index
    %43 = vector.load %arg8[%c0_32, %c0_33] : memref<64x2xbf16, #tpu.memory_space<vmem>>, vector<64x2xbf16>
    %cst_34 = arith.constant dense<0.000000e+00> : vector<2x2xf32>
    %44 = tpu.matmul %42, %43, %cst_34 {dimension_numbers = #tpu.dot_dimension_numbers<[1], [0], [0], [1], [0, 0, 1, 1], [], []>} : vector<2x64xbf16>, vector<64x2xbf16>, vector<2x2xf32> -> vector<2x2xf32>
    %c0_35 = arith.constant 0 : index
    %c0_36 = arith.constant 0 : index
    %45 = vector.load %arg9[%c0_35, %c0_36] : memref<1x2xf32, #tpu.memory_space<vmem>>, vector<1x2xf32>
    %46 = vector.broadcast %45 : vector<1x2xf32> to vector<2x2xf32>
    %47 = arith.addf %44, %46 : vector<2x2xf32>
    %c0_37 = arith.constant 0 : index
    %c0_38 = arith.constant 0 : index
    %48 = vector.load %arg10[%c0_37, %c0_38] : memref<2x2xf32, #tpu.memory_space<vmem>>, vector<2x2xf32>
    tpu.vector_store %arg10[%c0_37, %c0_38], %47 {strides = array<i32>} : memref<2x2xf32, #tpu.memory_space<vmem>>, vector<2x2xf32>,
    return
  }
  func.func @transform_0(%arg0: i32, %arg1: memref<1xi32, #tpu.memory_space<smem>>) -> (i32, i32, i32) {
    %c0_i32 = arith.constant 0 : i32
    %c0_i32_0 = arith.constant 0 : i32
    %c0_i32_1 = arith.constant 0 : i32
    %c0_i32_2 = arith.constant 0 : i32
    return %c0_i32, %c0_i32_0, %c0_i32_1 : i32, i32, i32
  }
  func.func @transform_1(%arg0: i32, %arg1: memref<1xi32, #tpu.memory_space<smem>>) -> (i32, i32, i32) {
    %c0_i32 = arith.constant 0 : i32
    %c0_i32_0 = arith.constant 0 : i32
    %c0_i32_1 = arith.constant 0 : i32
    %c0_i32_2 = arith.constant 0 : i32
    return %c0_i32, %c0_i32_0, %c0_i32_1 : i32, i32, i32
  }
  func.func @transform_2(%arg0: i32, %arg1: memref<1xi32, #tpu.memory_space<smem>>) -> (i32, i32) {
    %c0_i32 = arith.constant 0 : i32
    %c0_i32_0 = arith.constant 0 : i32
    %c0_i32_1 = arith.constant 0 : i32
    return %c0_i32, %c0_i32_0 : i32, i32
  }
  func.func @transform_3(%arg0: i32, %arg1: memref<1xi32, #tpu.memory_space<smem>>) -> (i32, i32) {
    %c0_i32 = arith.constant 0 : i32
    %c0_i32_0 = arith.constant 0 : i32
    %c0_i32_1 = arith.constant 0 : i32
    return %c0_i32, %c0_i32_0 : i32, i32
  }
  func.func @transform_4(%arg0: i32, %arg1: memref<1xi32, #tpu.memory_space<smem>>) -> (i32, i32) {
    %c0_i32 = arith.constant 0 : i32
    %c0_i32_0 = arith.constant 0 : i32
    %c0_i32_1 = arith.constant 0 : i32
    return %c0_i32, %c0_i32_0 : i32, i32
  }
  func.func @transform_5(%arg0: i32, %arg1: memref<1xi32, #tpu.memory_space<smem>>) -> (i32, i32) {
    %c0_i32 = arith.constant 0 : i32
    %c0_i32_0 = arith.constant 0 : i32
    %c0_i32_1 = arith.constant 0 : i32
    return %c0_i32, %c0_i32_0 : i32, i32
  }
  func.func @transform_6(%arg0: i32, %arg1: memref<1xi32, #tpu.memory_space<smem>>) -> (i32, i32) {
    %c0_i32 = arith.constant 0 : i32
    %c0_i32_0 = arith.constant 0 : i32
    %c0_i32_1 = arith.constant 0 : i32
    return %c0_i32, %c0_i32_0 : i32, i32
  }
  func.func @transform_7(%arg0: i32, %arg1: memref<1xi32, #tpu.memory_space<smem>>) -> (i32, i32) {
    %c0_i32 = arith.constant 0 : i32
    %c0_i32_0 = arith.constant 0 : i32
    %c0_i32_1 = arith.constant 0 : i32
    return %c0_i32, %c0_i32_0 : i32, i32
  }
  func.func @transform_8(%arg0: i32, %arg1: memref<1xi32, #tpu.memory_space<smem>>) -> (i32, i32) {
    %c0_i32 = arith.constant 0 : i32
    %c0_i32_0 = arith.constant 0 : i32
    %c0_i32_1 = arith.constant 0 : i32
    return %c0_i32, %c0_i32_0 : i32, i32
  }
}

</mosaic_0001>

<llo_original>
// kernel: sentiment_rnn_forward.2
$region0: #{sentiment_rnn_forward.2}
  #allocation0 [shape = 'u32[]', space=smem, size = 0x4, offset = 0x4, fixed_abs, tag = 'smem constant byte address 0x4 - core index']
  #allocation1 [shape = 'u32[144,128]{1,0:T(1,128)}', space=vmem, size = 0x12000, scoped, tag = 'internal scratch']
  #allocation2 [shape = 'f32[8,2,192]{2,1,0:T(2,128)}', space=vmem, size = 0x4000, scoped, tag = 'scratch operand']
  #allocation3 [shape = 'f32[2,64]{1,0:T(2,128)}', space=vmem, size = 0x400, scoped, tag = 'scratch operand']
  #allocation4 [shape = 's32[1]{0}', space=sflag, size = 0x4, scoped, tag = 'scoped memory for sentiment_rnn_forward.2']
  #allocation5 [shape = 's32[1]{0:T(128)S(6)}', space=smem, size = 0x200, scoped, tag = 'prefetched SMEM operand 0']
  %s0 = inlined_call_operand.<no memory space> [shape: s32[1], index: 0, kind: input, shape index: {}]
  %s1 = inlined_call_operand.vmem [shape: f32[8,2,16], index: 1, kind: input, shape index: {}]
  %s2 = inlined_call_operand.vmem [shape: f32[8,2,1], index: 2, kind: input, shape index: {}]
  %s3 = inlined_call_operand.hbm [shape: bf16[16,192], index: 3, kind: input, shape index: {}]
  %s4 = inlined_call_operand.vmem [shape: f32[1,192], index: 4, kind: input, shape index: {}]
  %s5 = inlined_call_operand.vmem [shape: bf16[64,192], index: 5, kind: input, shape index: {}]
  %s6 = inlined_call_operand.vmem [shape: f32[1,192], index: 6, kind: input, shape index: {}]
  %s7 = inlined_call_operand.vmem [shape: f32[8,2,64], index: 7, kind: output, shape index: {}]
  %s8 = sld [smem:[#allocation0]]
  $region52: #{sentiment_rnn_forward.2} parent=0
    _
  %s10 = ssub.s32 1, %s8
  %s11 = scalar_select 0, %s10, %s8
  %12 = sst [smem:[#allocation5]] %s0
  $region1: #{sentiment_rnn_forward.2} parent=0
    #allocation6 [shape = 'u8[8192]{0}', space=vmem, size = 0x2000, scoped, tag = 'input window, operand 3, single buffered']
    #allocation7 [shape = 's32[1]{0}', space=sflag, size = 0x4, scoped, tag = 'scoped memory for sentiment_rnn_forward.2']
    %13 = vsyncpa [#allocation7], 0
    // Predicated region
    $region2: #{sentiment_rnn_forward.2} parent=1 // pred_check
      _
    $region3: #{sentiment_rnn_forward.2} parent=1 // pred_check_branch
      %15 = sbr.rel (0) target = $region5
    $region4: #{sentiment_rnn_forward.2} parent=1 // pred_region
      _
    $region5: #{sentiment_rnn_forward.2} parent=1 // pred_fallthru
      _
    // Predicated region
    $region6: #{sentiment_rnn_forward.2} parent=1 // pred_check
      _
    $region7: #{sentiment_rnn_forward.2} parent=1 // pred_check_branch
      %17 = sbr.rel (0) target = $region9
    $region8: #{sentiment_rnn_forward.2} parent=1 // pred_region
      _
    $region9: #{sentiment_rnn_forward.2} parent=1 // pred_fallthru
      _
    // Predicated region
    $region10: #{sentiment_rnn_forward.2} parent=1 // pred_check
      _
    $region11: #{sentiment_rnn_forward.2} parent=1 // pred_check_branch
      %19 = sbr.rel (0) target = $region13
    $region12: #{sentiment_rnn_forward.2} parent=1 // pred_region
      %s21 = ssub.s32 256, 256
      %22 = vsyncadd [#allocation7], %s21
      %s23 = sshll.u32 [#allocation6], 4
      %s24 = int_to_ptr.vmem [resolvable:$true] %s23
      %29 = dma.hbm_to_vmem [thread:$0]  %s3, 256, %s24, [#allocation7], 128, 128, 8
    $region13: #{sentiment_rnn_forward.2} parent=1 // pred_fallthru
      _
    // Predicated region
    $region14: #{sentiment_rnn_forward.2} parent=1 // pred_check
      _
    $region15: #{sentiment_rnn_forward.2} parent=1 // pred_check_branch
      %31 = sbr.rel (0) target = $region17
    $region16: #{sentiment_rnn_forward.2} parent=1 // pred_region
      _
    $region17: #{sentiment_rnn_forward.2} parent=1 // pred_fallthru
      _
    // Predicated region
    $region18: #{sentiment_rnn_forward.2} parent=1 // pred_check
      _
    $region19: #{sentiment_rnn_forward.2} parent=1 // pred_check_branch
      %33 = sbr.rel (0) target = $region21
    $region20: #{sentiment_rnn_forward.2} parent=1 // pred_region
      _
    $region21: #{sentiment_rnn_forward.2} parent=1 // pred_fallthru
      _
    // Predicated region
    $region22: #{sentiment_rnn_forward.2} parent=1 // pred_check
      _
    $region23: #{sentiment_rnn_forward.2} parent=1 // pred_check_branch
      %35 = sbr.rel (0) target = $region25
    $region24: #{sentiment_rnn_forward.2} parent=1 // pred_region
      _
    $region25: #{sentiment_rnn_forward.2} parent=1 // pred_fallthru
      _
    // Predicated region
    $region26: #{sentiment_rnn_forward.2} parent=1 // pred_check
      _
    $region27: #{sentiment_rnn_forward.2} parent=1 // pred_check_branch
      %37 = sbr.rel (0) target = $region29
    $region28: #{sentiment_rnn_forward.2} parent=1 // pred_region
      %38 = dma.done [#allocation7], 256
    $region29: #{sentiment_rnn_forward.2} parent=1 // pred_fallthru
      _
    %v40 = vld [vmem:[#allocation6] sm:$0xff]
    %v41 = vld [vmem:[#allocation6 + $0x8] sm:$0xff]
    %v42 = vld [vmem:[%s5] sm:$0xff]
    %v43 = vld [vmem:[%s5 + $0x8] sm:$0xff]
    %v44 = vld [vmem:[%s5 + $0x10] sm:$0xff]
    %v45 = vld [vmem:[%s5 + $0x18] sm:$0xff]
    %v46 = vld [vmem:[%s5 + $0x20] sm:$0xff]
    %v47 = vld [vmem:[%s5 + $0x28] sm:$0xff]
    %v48 = vld [vmem:[%s5 + $0x30] sm:$0xff]
    %v49 = vld [vmem:[%s5 + $0x38] sm:$0xff]
    %v50 = vld [vmem:[%s4] sm:$0x3]
    %v51 = vld [vmem:[%s6] sm:$0x3]
    %s52 = sld [smem:[#allocation5]]
    // While loop
    $region30: #{sentiment_rnn_forward.2} parent=1 // loop_pre_header
      _
    $region31: #{sentiment_rnn_forward.2} parent=1 // loop_header
      %s54 = sphi 0, %s56
      %p55 = scmp.ge.s32.totalorder %s54, %s52
    $region32: #{sentiment_rnn_forward.2} parent=1 // loop_header_branch
      %58 = sbr.rel (%p55) target = $region36
    $region33: #{sentiment_rnn_forward.2} parent=1 // loop_body
      %s59 = smul.u32 %s54, 2
      %s60 = scalar_lea.vmem %s1, %s59
      %v61 = vld [vmem:[%s60] sm:$0x3]
      %v62 = vpack.c.bf16 %v61, %v61
      %v64 = vlaneseq
      %v65 = vshrl.u32 %v64, 7
      %v66 = vsub.s32 0, %v65
      %v67 = vrot.slane %v50, %v66
      %v68 = vlaneseq
      %v69 = vshrl.u32 %v68, 7
      %v70 = vsub.s32 1, %v69
      %v71 = vrot.slane %v50, %v70
      %v76 = vunpack.c.l.b16 %v40
      %v77 = vunpack.c.h.b16 %v40
      %v78 = vunpack.c.l.b16 %v41
      %v79 = vunpack.c.h.b16 %v41
      %v80 = vpack.c.b16 %v78, %v76
      %v81 = vpack.c.b16 %v79, %v77
      %vm84 = vcmask 130048
      %v86 = vsel %vm84, %v62, 0
      %88 = vmatprep.subr.bf16.mxu0 %v81
      %89 = vmatpush1.bf16.msra.mxu0 %v80
      %90 = vmatprep.subr.bf16.mxu0 0
      %91 = vmatpush1.bf16.msra.mxu0 0
      %92 = vmatprep.subr.bf16.mxu0 0
      %93 = vmatpush1.bf16.msra.mxu0 0
      %94 = vmatprep.subr.bf16.mxu0 0
      %95 = vmatpush1.bf16.msra.mxu0 0
      %96 = vmatprep.subr.bf16.mxu0 0
      %97 = vmatpush1.bf16.msra.mxu0 0
      %98 = vmatprep.subr.bf16.mxu0 0
      %99 = vmatpush1.bf16.msra.mxu0 0
      %100 = vmatprep.subr.bf16.mxu0 0
      %101 = vmatpush1.bf16.msra.mxu0 0
      %102 = vmatprep.subr.bf16.mxu0 0
      %103 = vmatpush1.bf16.msra.mxu0 0
      %104 = vmatprep.subr.bf16.mxu0 0
      %105 = vmatpush1.bf16.msra.mxu0 0
      %106 = vmatprep.subr.bf16.mxu0 0
      %107 = vmatpush1.bf16.msra.mxu0 0
      %108 = vmatprep.subr.bf16.mxu0 0
      %109 = vmatpush1.bf16.msra.mxu0 0
      %110 = vmatprep.subr.bf16.mxu0 0
      %111 = vmatpush1.bf16.msra.mxu0 0
      %112 = vmatprep.subr.bf16.mxu0 0
      %113 = vmatpush1.bf16.msra.mxu0 0
      %114 = vmatprep.subr.bf16.mxu0 0
      %115 = vmatpush1.bf16.msra.mxu0 0
      %116 = vmatprep.subr.bf16.mxu0 0
      %117 = vmatpush1.bf16.msra.mxu0 0
      %118 = vmatprep.subr.bf16.mxu0 0
      %119 = vmatpush1.bf16.msra.mxu0 0
      %120 = vmatprep.mubr.bf16.mxu0 0
      %121 = vmatmul.mubr.bf16.gmra.mrb[0].mxu0 %v86
      %v122 = vpop.f32.mrb[0].mxu0
      %v123 = vadd.f32 %v67, %v122
      %v124 = vpop.f32.mrb[0].mxu0
      %v125 = vadd.f32 %v71, %v124
      %v126 = vpop.f32.mrb[0].mxu0
      %v127 = vpop.f32.mrb[0].mxu0
      %128 = vdwg.mxu0
      %v131 = vcombine.low %v123, %v125
      %v133 = vunpack.c.l.s4 1983009808
      %v134 = vunpack.c.0.s8 %v133
      %v135 = vlaneseq
      %v136 = vshrl.u32 %v135, 7
      %v137 = vsub.s32 %v134, %v136
      %v138 = vrot.slane %v131, %v137
      %s140 = smul.addr %s59, 2
      %s141 = scalar_lea.vmem [#allocation2], %s140
      %vm142 = vcmask 1041408
      %vm143 = vcmask 519170
      %vm144 = vmor %vm143, %vm142
      %145 = vst.msk [vmem:[%s141] sm:$0xf] %vm144, %v138
    $region34: #{sentiment_rnn_forward.2} parent=1 // loop_footer
      %s56 = sadd.s32 %s54, 1
    $region35: #{sentiment_rnn_forward.2} parent=1 // loop_footer_branch
      %53 = sbr.rel target = $region31
    $region36: #{sentiment_rnn_forward.2} parent=1 // loop_exit
      _
    %vm146 = vcmask 517120
    %147 = vst.msk [vmem:[#allocation3] sm:$0x3] %vm146, 0.0
    %148 = vst.msk [vmem:[%s7] sm:$0x3] %vm146, 0.0
    %149 = vst.msk [vmem:[%s7 + $0x2] sm:$0x3] %vm146, 0.0
    %150 = vst.msk [vmem:[%s7 + $0x4] sm:$0x3] %vm146, 0.0
    %151 = vst.msk [vmem:[%s7 + $0x6] sm:$0x3] %vm146, 0.0
    %152 = vst.msk [vmem:[%s7 + $0x8] sm:$0x3] %vm146, 0.0
    %153 = vst.msk [vmem:[%s7 + $0xa] sm:$0x3] %vm146, 0.0
    %154 = vst.msk [vmem:[%s7 + $0xc] sm:$0x3] %vm146, 0.0
    %155 = vst.msk [vmem:[%s7 + $0xe] sm:$0x3] %vm146, 0.0
    %v156 = vlaneseq
    %v157 = vand.u32 %v156, 127
    %v158 = vadd.s32 %v157, 128
    %vm159 = vcmp.lt.s32.totalorder %v157, 0
    %v160 = vsub.s32 0, %v157
    %v161 = vsel %vm159, %v160, %v157
    %v162 = vshrl.u32 %v161, 6
    %v163 = vand.u32 %v161, 63
    %v164 = vsub.s32 0, %v163
    %v165 = vsel %vm159, %v164, %v163
    %vm166 = vcmp.lt.s32.totalorder %v158, 0
    %v167 = vsub.s32 0, %v158
    %v168 = vsel %vm166, %v167, %v158
    %v169 = vshrl.u32 %v168, 6
    %v170 = vand.u32 %v168, 63
    %v171 = vsub.s32 0, %v170
    %v172 = vsel %vm166, %v171, %v170
    %vm173 = vcmp.ne.s32.totalorder %v165, 0
    %vm174 = vcmp.ne.s32.totalorder %v172, 0
    %vm175 = vcmp.lt.s32.totalorder %v165, 0
    %vm176 = vcmp.lt.s32.totalorder %v172, 0
    %vm177 = vmand %vm175, %vm173
    %vm178 = vmand %vm176, %vm174
    %v179 = vadd.s32 %v165, 64
    %v180 = vadd.s32 %v172, 64
    %v181 = vsel %vm177, %v179, %v165
    %v182 = vsel %vm178, %v180, %v172
    %vm183 = vcmp.lt.s32.totalorder %v181, 32
    %vm184 = vcmp.lt.s32.totalorder %v182, 32
    %vm185 = vcmp.lt.s32.totalorder %v157, 32
    // While loop
    $region37: #{sentiment_rnn_forward.2} parent=1 // loop_pre_header
      _
    $region38: #{sentiment_rnn_forward.2} parent=1 // loop_header
      %s187 = sphi 0, %s189
      %p188 = scmp.ge.s32.totalorder %s187, %s52
    $region39: #{sentiment_rnn_forward.2} parent=1 // loop_header_branch
      %191 = sbr.rel (%p188) target = $region43
    $region40: #{sentiment_rnn_forward.2} parent=1 // loop_body
      %s192 = ssub.s32 %s52, 1
      %s193 = ssub.s32 %s192, %s187
      %v194 = vld [vmem:[#allocation3] sm:$0x3]
      %v195 = vpack.c.bf16 %v194, %v194
      %v197 = vlaneseq
      %v198 = vshrl.u32 %v197, 7
      %v199 = vsub.s32 0, %v198
      %v200 = vrot.slane %v51, %v199
      %v201 = vlaneseq
      %v202 = vshrl.u32 %v201, 7
      %v203 = vsub.s32 1, %v202
      %v204 = vrot.slane %v51, %v203
      %v215 = vunpack.c.l.b16 %v42
      %v216 = vunpack.c.h.b16 %v42
      %v217 = vunpack.c.l.b16 %v43
      %v218 = vunpack.c.h.b16 %v43
      %v219 = vunpack.c.l.b16 %v44
      %v220 = vunpack.c.h.b16 %v44
      %v221 = vunpack.c.l.b16 %v45
      %v222 = vunpack.c.h.b16 %v45
      %v223 = vunpack.c.l.b16 %v46
      %v224 = vunpack.c.h.b16 %v46
      %v225 = vunpack.c.l.b16 %v47
      %v226 = vunpack.c.h.b16 %v47
      %v227 = vunpack.c.l.b16 %v48
      %v228 = vunpack.c.h.b16 %v48
      %v229 = vunpack.c.l.b16 %v49
      %v230 = vunpack.c.h.b16 %v49
      %v231 = vpack.c.b16 %v217, %v215
      %v232 = vpack.c.b16 %v218, %v216
      %v233 = vpack.c.b16 %v221, %v219
      %v234 = vpack.c.b16 %v222, %v220
      %v235 = vpack.c.b16 %v225, %v223
      %v236 = vpack.c.b16 %v226, %v224
      %v237 = vpack.c.b16 %v229, %v227
      %v238 = vpack.c.b16 %v230, %v228
      %vm247 = vcmask 523264
      %v249 = vsel %vm247, %v195, 0
      %251 = vmatprep.subr.bf16.mxu0 %v232
      %252 = vmatpush1.bf16.msra.mxu0 %v231
      %253 = vmatprep.subr.bf16.mxu0 %v234
      %254 = vmatpush1.bf16.msra.mxu0 %v233
      %255 = vmatprep.subr.bf16.mxu0 %v236
      %256 = vmatpush1.bf16.msra.mxu0 %v235
      %257 = vmatprep.subr.bf16.mxu0 %v238
      %258 = vmatpush1.bf16.msra.mxu0 %v237
      %259 = vmatprep.subr.bf16.mxu0 0
      %260 = vmatpush1.bf16.msra.mxu0 0
      %261 = vmatprep.subr.bf16.mxu0 0
      %262 = vmatpush1.bf16.msra.mxu0 0
      %263 = vmatprep.subr.bf16.mxu0 0
      %264 = vmatpush1.bf16.msra.mxu0 0
      %265 = vmatprep.subr.bf16.mxu0 0
      %266 = vmatpush1.bf16.msra.mxu0 0
      %267 = vmatprep.subr.bf16.mxu0 0
      %268 = vmatpush1.bf16.msra.mxu0 0
      %269 = vmatprep.subr.bf16.mxu0 0
      %270 = vmatpush1.bf16.msra.mxu0 0
      %271 = vmatprep.subr.bf16.mxu0 0
      %272 = vmatpush1.bf16.msra.mxu0 0
      %273 = vmatprep.subr.bf16.mxu0 0
      %274 = vmatpush1.bf16.msra.mxu0 0
      %275 = vmatprep.subr.bf16.mxu0 0
      %276 = vmatpush1.bf16.msra.mxu0 0
      %277 = vmatprep.subr.bf16.mxu0 0
      %278 = vmatpush1.bf16.msra.mxu0 0
      %279 = vmatprep.subr.bf16.mxu0 0
      %280 = vmatpush1.bf16.msra.mxu0 0
      %281 = vmatprep.subr.bf16.mxu0 0
      %282 = vmatpush1.bf16.msra.mxu0 0
      %283 = vmatprep.mubr.bf16.mxu0 0
      %284 = vmatmul.mubr.bf16.gmra.mrb[0].mxu0 %v249
      %v285 = vpop.f32.mrb[0].mxu0
      %v286 = vadd.f32 %v200, %v285
      %v287 = vpop.f32.mrb[0].mxu0
      %v288 = vadd.f32 %v204, %v287
      %v289 = vpop.f32.mrb[0].mxu0
      %v290 = vpop.f32.mrb[0].mxu0
      %291 = vdwg.mxu0
      %s292 = smul.u32 %s187, 2
      %s293 = smul.addr %s292, 2
      %s294 = scalar_lea.vmem [#allocation2], %s293
      %v295 = vld [vmem:[%s294] sm:$0xf]
      %s296 = smul.u32 %s193, 2
      %s297 = smul.addr %s296, 2
      %s298 = scalar_lea.vmem [#allocation2], %s297
      %v299 = vld [vmem:[%s298] sm:$0xf]
      %v300 = vsel %vm183, 1, 0
      %v301 = vsel %vm184, 1, 0
      %vm302 = vcmp.eq.s32.totalorder %v300, 1
      %vm303 = vcmp.eq.s32.totalorder %v301, 1
      %v306 = vunpack.c.l.s4 1983009808
      %v307 = vunpack.c.0.s8 %v306
      %v308 = vlaneseq
      %v309 = vshrl.u32 %v308, 7
      %v310 = vsub.s32 %v307, %v309
      %v311 = vrot.slane %v295, %v310
      %v312 = vcombine.high %v311, %v311
      %v317 = vunpack.c.l.s4 1983009808
      %v318 = vunpack.c.0.s8 %v317
      %v319 = vlaneseq
      %v320 = vshrl.u32 %v319, 7
      %v321 = vsub.s32 %v318, %v320
      %v322 = vrot.slane %v299, %v321
      %v323 = vcombine.high %v322, %v322
      %v326 = vsel %vm302, %v311, %v322
      %v327 = vsel %vm303, %v312, %v323
      %s328 = scalar_lea.vmem %s2, %s292
      %v329 = vld [vmem:[%s328] sm:$0x3]
      %s330 = scalar_lea.vmem %s2, %s296
      %v331 = vld [vmem:[%s330] sm:$0x3]
      %v332 = vsel %vm185, 1, 0
      %vm333 = vcmp.eq.s32.totalorder %v332, 1
      %335 = vset.pattern.permute.xlu0 0
      %336 = vperm.xlu0 %335, %v329
      %v337 = vpop.permute.xlu0 %336
      %340 = vset.pattern.permute.xlu0 0
      %341 = vperm.xlu0 %340, %v331
      %v342 = vpop.permute.xlu0 %341
      %v344 = vsel %vm333, %v337, %v342
      %v345 = vadd.f32 %v326, %v286
      %v346 = vxor.u32 %v345, 2147483648
      %v347 = vmul.f32 %v346, 1.442695
      %v348 = vpow.pop %v347
      %v349 = vadd.f32 %v348, 1.0
      %v350 = vrcp.pop %v349
      %v351 = vmul.f32 1.0, %v350
      %v352 = vmul.f32 %v351, %v288
      %v353 = vadd.f32 %v327, %v352
      %v354 = vtanh.pop %v353
      %v355 = vsub.f32 1.0, %v351
      %357 = vrot.lane.b32.xlu0 %v354, 64
      %v358 = vpop.permute.xlu0 %357
      %v360 = vmul.f32 %v355, %v358
      %362 = vrot.lane.b32.xlu0 %v194, 64
      %v363 = vpop.permute.xlu0 %362
      %v365 = vmul.f32 %v351, %v363
      %v366 = vadd.f32 %v360, %v365
      %368 = vrot.lane.b32.xlu0 %v366, 64
      %v369 = vpop.permute.xlu0 %368
      %v371 = vmul.f32 %v344, %v369
      %v372 = vsub.f32 1.0, %v344
      %v373 = vmul.f32 %v372, %v194
      %v374 = vadd.f32 %v371, %v373
      %375 = vst.msk [vmem:[#allocation3] sm:$0x3] %vm146, %v374
      %v376 = vmul.f32 %v337, %v374
      %s377 = scalar_lea.vmem %s7, %s292
      %vm378 = vcmask 254976
      %379 = vst.msk [vmem:[%s377] sm:$0x3] %vm378, %v376
      %v380 = vmul.f32 %v342, %v374
      %s381 = scalar_lea.vmem %s7, %s296
      %vm382 = vcmask 517376
      %383 = vst.msk [vmem:[%s381] sm:$0x3] %vm382, %v380
    $region41: #{sentiment_rnn_forward.2} parent=1 // loop_footer
      %s189 = sadd.s32 %s187, 1
    $region42: #{sentiment_rnn_forward.2} parent=1 // loop_footer_branch
      %186 = sbr.rel target = $region38
    $region43: #{sentiment_rnn_forward.2} parent=1 // loop_exit
      _
    // Predicated region
    $region44: #{sentiment_rnn_forward.2} parent=1 // pred_check
      _
    $region45: #{sentiment_rnn_forward.2} parent=1 // pred_check_branch
      %385 = sbr.rel (0) target = $region47
    $region46: #{sentiment_rnn_forward.2} parent=1 // pred_region
      _
    $region47: #{sentiment_rnn_forward.2} parent=1 // pred_fallthru
      _
    // Predicated region
    $region48: #{sentiment_rnn_forward.2} parent=1 // pred_check
      _
    $region49: #{sentiment_rnn_forward.2} parent=1 // pred_check_branch
      %387 = sbr.rel (0) target = $region51
    $region50: #{sentiment_rnn_forward.2} parent=1 // pred_region
      _
    $region51: #{sentiment_rnn_forward.2} parent=1 // pred_fallthru
      _
    %388 = vsyncpa [#allocation7], 1

// kernel: sentiment_rnn_forward.3
$region0: #{sentiment_rnn_forward.3}
  #allocation0 [shape = 'u32[]', space=smem, size = 0x4, offset = 0x4, fixed_abs, tag = 'smem constant byte address 0x4 - core index']
  #allocation1 [shape = 'u32[144,128]{1,0:T(1,128)}', space=vmem, size = 0x12000, scoped, tag = 'internal scratch']
  #allocation2 [shape = 'f32[8,2,192]{2,1,0:T(2,128)}', space=vmem, size = 0x4000, scoped, tag = 'scratch operand']
  #allocation3 [shape = 'f32[2,64]{1,0:T(2,128)}', space=vmem, size = 0x400, scoped, tag = 'scratch operand']
  #allocation4 [shape = 's32[1]{0}', space=sflag, size = 0x4, scoped, tag = 'scoped memory for sentiment_rnn_forward.3']
  #allocation5 [shape = 's32[1]{0:T(128)S(6)}', space=smem, size = 0x200, scoped, tag = 'prefetched SMEM operand 0']
  %s0 = inlined_call_operand.<no memory space> [shape: s32[1], index: 0, kind: input, shape index: {}]
  %s1 = inlined_call_operand.vmem [shape: f32[8,2,64], index: 1, kind: input, shape index: {}]
  %s2 = inlined_call_operand.vmem [shape: f32[8,2,1], index: 2, kind: input, shape index: {}]
  %s3 = inlined_call_operand.vmem [shape: bf16[64,192], index: 3, kind: input, shape index: {}]
  %s4 = inlined_call_operand.vmem [shape: f32[1,192], index: 4, kind: input, shape index: {}]
  %s5 = inlined_call_operand.vmem [shape: bf16[64,192], index: 5, kind: input, shape index: {}]
  %s6 = inlined_call_operand.vmem [shape: f32[1,192], index: 6, kind: input, shape index: {}]
  %s7 = inlined_call_operand.vmem [shape: bf16[64,2], index: 7, kind: input, shape index: {}]
  %s8 = inlined_call_operand.vmem [shape: f32[1,2], index: 8, kind: input, shape index: {}]
  %s9 = inlined_call_operand.hbm [shape: f32[2,2], index: 9, kind: output, shape index: {}]
  %s10 = sld [smem:[#allocation0]]
  $region56: #{sentiment_rnn_forward.3} parent=0
    _
  %s12 = ssub.s32 1, %s10
  %s13 = scalar_select 0, %s12, %s10
  %14 = sst [smem:[#allocation5]] %s0
  $region1: #{sentiment_rnn_forward.3} parent=0
    #allocation6 [shape = 'u8[1024]{0}', space=vmem, size = 0x400, scoped, tag = 'output window, operand 0, single buffered']
    #allocation7 [shape = 's32[1]{0}', space=sflag, size = 0x4, scoped, tag = 'scoped memory for sentiment_rnn_forward.3']
    %15 = vsyncpa [#allocation7], 0
    // Predicated region
    $region2: #{sentiment_rnn_forward.3} parent=1 // pred_check
      _
    $region3: #{sentiment_rnn_forward.3} parent=1 // pred_check_branch
      %17 = sbr.rel (0) target = $region5
    $region4: #{sentiment_rnn_forward.3} parent=1 // pred_region
      _
    $region5: #{sentiment_rnn_forward.3} parent=1 // pred_fallthru
      _
    // Predicated region
    $region6: #{sentiment_rnn_forward.3} parent=1 // pred_check
      _
    $region7: #{sentiment_rnn_forward.3} parent=1 // pred_check_branch
      %19 = sbr.rel (0) target = $region9
    $region8: #{sentiment_rnn_forward.3} parent=1 // pred_region
      _
    $region9: #{sentiment_rnn_forward.3} parent=1 // pred_fallthru
      _
    // Predicated region
    $region10: #{sentiment_rnn_forward.3} parent=1 // pred_check
      _
    $region11: #{sentiment_rnn_forward.3} parent=1 // pred_check_branch
      %21 = sbr.rel (0) target = $region13
    $region12: #{sentiment_rnn_forward.3} parent=1 // pred_region
      _
    $region13: #{sentiment_rnn_forward.3} parent=1 // pred_fallthru
      _
    // Predicated region
    $region14: #{sentiment_rnn_forward.3} parent=1 // pred_check
      _
    $region15: #{sentiment_rnn_forward.3} parent=1 // pred_check_branch
      %23 = sbr.rel (0) target = $region17
    $region16: #{sentiment_rnn_forward.3} parent=1 // pred_region
      _
    $region17: #{sentiment_rnn_forward.3} parent=1 // pred_fallthru
      _
    // Predicated region
    $region18: #{sentiment_rnn_forward.3} parent=1 // pred_check
      _
    $region19: #{sentiment_rnn_forward.3} parent=1 // pred_check_branch
      %25 = sbr.rel (0) target = $region21
    $region20: #{sentiment_rnn_forward.3} parent=1 // pred_region
      _
    $region21: #{sentiment_rnn_forward.3} parent=1 // pred_fallthru
      _
    // Predicated region
    $region22: #{sentiment_rnn_forward.3} parent=1 // pred_check
      _
    $region23: #{sentiment_rnn_forward.3} parent=1 // pred_check_branch
      %27 = sbr.rel (0) target = $region25
    $region24: #{sentiment_rnn_forward.3} parent=1 // pred_region
      _
    $region25: #{sentiment_rnn_forward.3} parent=1 // pred_fallthru
      _
    // Predicated region
    $region26: #{sentiment_rnn_forward.3} parent=1 // pred_check
      _
    $region27: #{sentiment_rnn_forward.3} parent=1 // pred_check_branch
      %29 = sbr.rel (0) target = $region29
    $region28: #{sentiment_rnn_forward.3} parent=1 // pred_region
      _
    $region29: #{sentiment_rnn_forward.3} parent=1 // pred_fallthru
      _
    // Predicated region
    $region30: #{sentiment_rnn_forward.3} parent=1 // pred_check
      _
    $region31: #{sentiment_rnn_forward.3} parent=1 // pred_check_branch
      %31 = sbr.rel (0) target = $region33
    $region32: #{sentiment_rnn_forward.3} parent=1 // pred_region
      _
    $region33: #{sentiment_rnn_forward.3} parent=1 // pred_fallthru
      _
    %v33 = vld [vmem:[%s3] sm:$0xff]
    %v34 = vld [vmem:[%s3 + $0x8] sm:$0xff]
    %v35 = vld [vmem:[%s3 + $0x10] sm:$0xff]
    %v36 = vld [vmem:[%s3 + $0x18] sm:$0xff]
    %v37 = vld [vmem:[%s3 + $0x20] sm:$0xff]
    %v38 = vld [vmem:[%s3 + $0x28] sm:$0xff]
    %v39 = vld [vmem:[%s3 + $0x30] sm:$0xff]
    %v40 = vld [vmem:[%s3 + $0x38] sm:$0xff]
    %v41 = vld [vmem:[%s5] sm:$0xff]
    %v42 = vld [vmem:[%s5 + $0x8] sm:$0xff]
    %v43 = vld [vmem:[%s5 + $0x10] sm:$0xff]
    %v44 = vld [vmem:[%s5 + $0x18] sm:$0xff]
    %v45 = vld [vmem:[%s5 + $0x20] sm:$0xff]
    %v46 = vld [vmem:[%s5 + $0x28] sm:$0xff]
    %v47 = vld [vmem:[%s5 + $0x30] sm:$0xff]
    %v48 = vld [vmem:[%s5 + $0x38] sm:$0xff]
    %v49 = vld [vmem:[%s4] sm:$0x3]
    %v50 = vld [vmem:[%s6] sm:$0x3]
    %s51 = sld [smem:[#allocation5]]
    // While loop
    $region34: #{sentiment_rnn_forward.3} parent=1 // loop_pre_header
      _
    $region35: #{sentiment_rnn_forward.3} parent=1 // loop_header
      %s53 = sphi 0, %s55
      %p54 = scmp.ge.s32.totalorder %s53, %s51
    $region36: #{sentiment_rnn_forward.3} parent=1 // loop_header_branch
      %57 = sbr.rel (%p54) target = $region40
    $region37: #{sentiment_rnn_forward.3} parent=1 // loop_body
      %s58 = smul.u32 %s53, 2
      %s59 = scalar_lea.vmem %s1, %s58
      %v60 = vld [vmem:[%s59] sm:$0x3]
      %v61 = vpack.c.bf16 %v60, %v60
      %v63 = vlaneseq
      %v64 = vshrl.u32 %v63, 7
      %v65 = vsub.s32 0, %v64
      %v66 = vrot.slane %v49, %v65
      %v67 = vlaneseq
      %v68 = vshrl.u32 %v67, 7
      %v69 = vsub.s32 1, %v68
      %v70 = vrot.slane %v49, %v69
      %v81 = vunpack.c.l.b16 %v33
      %v82 = vunpack.c.h.b16 %v33
      %v83 = vunpack.c.l.b16 %v34
      %v84 = vunpack.c.h.b16 %v34
      %v85 = vunpack.c.l.b16 %v35
      %v86 = vunpack.c.h.b16 %v35
      %v87 = vunpack.c.l.b16 %v36
      %v88 = vunpack.c.h.b16 %v36
      %v89 = vunpack.c.l.b16 %v37
      %v90 = vunpack.c.h.b16 %v37
      %v91 = vunpack.c.l.b16 %v38
      %v92 = vunpack.c.h.b16 %v38
      %v93 = vunpack.c.l.b16 %v39
      %v94 = vunpack.c.h.b16 %v39
      %v95 = vunpack.c.l.b16 %v40
      %v96 = vunpack.c.h.b16 %v40
      %v97 = vpack.c.b16 %v83, %v81
      %v98 = vpack.c.b16 %v84, %v82
      %v99 = vpack.c.b16 %v87, %v85
      %v100 = vpack.c.b16 %v88, %v86
      %v101 = vpack.c.b16 %v91, %v89
      %v102 = vpack.c.b16 %v92, %v90
      %v103 = vpack.c.b16 %v95, %v93
      %v104 = vpack.c.b16 %v96, %v94
      %vm113 = vcmask 523264
      %v115 = vsel %vm113, %v61, 0
      %117 = vmatprep.subr.bf16.mxu0 %v98
      %118 = vmatpush1.bf16.msra.mxu0 %v97
      %119 = vmatprep.subr.bf16.mxu0 %v100
      %120 = vmatpush1.bf16.msra.mxu0 %v99
      %121 = vmatprep.subr.bf16.mxu0 %v102
      %122 = vmatpush1.bf16.msra.mxu0 %v101
      %123 = vmatprep.subr.bf16.mxu0 %v104
      %124 = vmatpush1.bf16.msra.mxu0 %v103
      %125 = vmatprep.subr.bf16.mxu0 0
      %126 = vmatpush1.bf16.msra.mxu0 0
      %127 = vmatprep.subr.bf16.mxu0 0
      %128 = vmatpush1.bf16.msra.mxu0 0
      %129 = vmatprep.subr.bf16.mxu0 0
      %130 = vmatpush1.bf16.msra.mxu0 0
      %131 = vmatprep.subr.bf16.mxu0 0
      %132 = vmatpush1.bf16.msra.mxu0 0
      %133 = vmatprep.subr.bf16.mxu0 0
      %134 = vmatpush1.bf16.msra.mxu0 0
      %135 = vmatprep.subr.bf16.mxu0 0
      %136 = vmatpush1.bf16.msra.mxu0 0
      %137 = vmatprep.subr.bf16.mxu0 0
      %138 = vmatpush1.bf16.msra.mxu0 0
      %139 = vmatprep.subr.bf16.mxu0 0
      %140 = vmatpush1.bf16.msra.mxu0 0
      %141 = vmatprep.subr.bf16.mxu0 0
      %142 = vmatpush1.bf16.msra.mxu0 0
      %143 = vmatprep.subr.bf16.mxu0 0
      %144 = vmatpush1.bf16.msra.mxu0 0
      %145 = vmatprep.subr.bf16.mxu0 0
      %146 = vmatpush1.bf16.msra.mxu0 0
      %147 = vmatprep.subr.bf16.mxu0 0
      %148 = vmatpush1.bf16.msra.mxu0 0
      %149 = vmatprep.mubr.bf16.mxu0 0
      %150 = vmatmul.mubr.bf16.gmra.mrb[0].mxu0 %v115
      %v151 = vpop.f32.mrb[0].mxu0
      %v152 = vadd.f32 %v66, %v151
      %v153 = vpop.f32.mrb[0].mxu0
      %v154 = vadd.f32 %v70, %v153
      %v155 = vpop.f32.mrb[0].mxu0
      %v156 = vpop.f32.mrb[0].mxu0
      %157 = vdwg.mxu0
      %v160 = vcombine.low %v152, %v154
      %v162 = vunpack.c.l.s4 1983009808
      %v163 = vunpack.c.0.s8 %v162
      %v164 = vlaneseq
      %v165 = vshrl.u32 %v164, 7
      %v166 = vsub.s32 %v163, %v165
      %v167 = vrot.slane %v160, %v166
      %s169 = smul.addr %s58, 2
      %s170 = scalar_lea.vmem [#allocation2], %s169
      %vm171 = vcmask 1041408
      %vm172 = vcmask 519170
      %vm173 = vmor %vm172, %vm171
      %174 = vst.msk [vmem:[%s170] sm:$0xf] %vm173, %v167
    $region38: #{sentiment_rnn_forward.3} parent=1 // loop_footer
      %s55 = sadd.s32 %s53, 1
    $region39: #{sentiment_rnn_forward.3} parent=1 // loop_footer_branch
      %52 = sbr.rel target = $region35
    $region40: #{sentiment_rnn_forward.3} parent=1 // loop_exit
      _
    %vm175 = vcmask 517120
    %176 = vst.msk [vmem:[#allocation3] sm:$0x3] %vm175, 0.0
    %v177 = vlaneseq
    %v178 = vand.u32 %v177, 127
    %v179 = vadd.s32 %v178, 128
    %vm180 = vcmp.lt.s32.totalorder %v178, 0
    %v181 = vsub.s32 0, %v178
    %v182 = vsel %vm180, %v181, %v178
    %v183 = vshrl.u32 %v182, 6
    %v184 = vand.u32 %v182, 63
    %v185 = vsub.s32 0, %v184
    %v186 = vsel %vm180, %v185, %v184
    %vm187 = vcmp.lt.s32.totalorder %v179, 0
    %v188 = vsub.s32 0, %v179
    %v189 = vsel %vm187, %v188, %v179
    %v190 = vshrl.u32 %v189, 6
    %v191 = vand.u32 %v189, 63
    %v192 = vsub.s32 0, %v191
    %v193 = vsel %vm187, %v192, %v191
    %vm194 = vcmp.ne.s32.totalorder %v186, 0
    %vm195 = vcmp.ne.s32.totalorder %v193, 0
    %vm196 = vcmp.lt.s32.totalorder %v186, 0
    %vm197 = vcmp.lt.s32.totalorder %v193, 0
    %vm198 = vmand %vm196, %vm194
    %vm199 = vmand %vm197, %vm195
    %v200 = vadd.s32 %v186, 64
    %v201 = vadd.s32 %v193, 64
    %v202 = vsel %vm198, %v200, %v186
    %v203 = vsel %vm199, %v201, %v193
    %vm204 = vcmp.lt.s32.totalorder %v202, 32
    %vm205 = vcmp.lt.s32.totalorder %v203, 32
    %vm206 = vcmp.lt.s32.totalorder %v178, 32
    // While loop
    $region41: #{sentiment_rnn_forward.3} parent=1 // loop_pre_header
      _
    $region42: #{sentiment_rnn_forward.3} parent=1 // loop_header
      %s208 = sphi 0, %s210
      %p209 = scmp.ge.s32.totalorder %s208, %s51
    $region43: #{sentiment_rnn_forward.3} parent=1 // loop_header_branch
      %212 = sbr.rel (%p209) target = $region47
    $region44: #{sentiment_rnn_forward.3} parent=1 // loop_body
      %s213 = ssub.s32 %s51, 1
      %s214 = ssub.s32 %s213, %s208
      %v215 = vld [vmem:[#allocation3] sm:$0x3]
      %v216 = vpack.c.bf16 %v215, %v215
      %v218 = vlaneseq
      %v219 = vshrl.u32 %v218, 7
      %v220 = vsub.s32 0, %v219
      %v221 = vrot.slane %v50, %v220
      %v222 = vlaneseq
      %v223 = vshrl.u32 %v222, 7
      %v224 = vsub.s32 1, %v223
      %v225 = vrot.slane %v50, %v224
      %v236 = vunpack.c.l.b16 %v41
      %v237 = vunpack.c.h.b16 %v41
      %v238 = vunpack.c.l.b16 %v42
      %v239 = vunpack.c.h.b16 %v42
      %v240 = vunpack.c.l.b16 %v43
      %v241 = vunpack.c.h.b16 %v43
      %v242 = vunpack.c.l.b16 %v44
      %v243 = vunpack.c.h.b16 %v44
      %v244 = vunpack.c.l.b16 %v45
      %v245 = vunpack.c.h.b16 %v45
      %v246 = vunpack.c.l.b16 %v46
      %v247 = vunpack.c.h.b16 %v46
      %v248 = vunpack.c.l.b16 %v47
      %v249 = vunpack.c.h.b16 %v47
      %v250 = vunpack.c.l.b16 %v48
      %v251 = vunpack.c.h.b16 %v48
      %v252 = vpack.c.b16 %v238, %v236
      %v253 = vpack.c.b16 %v239, %v237
      %v254 = vpack.c.b16 %v242, %v240
      %v255 = vpack.c.b16 %v243, %v241
      %v256 = vpack.c.b16 %v246, %v244
      %v257 = vpack.c.b16 %v247, %v245
      %v258 = vpack.c.b16 %v250, %v248
      %v259 = vpack.c.b16 %v251, %v249
      %vm268 = vcmask 523264
      %v270 = vsel %vm268, %v216, 0
      %272 = vmatprep.subr.bf16.mxu0 %v253
      %273 = vmatpush1.bf16.msra.mxu0 %v252
      %274 = vmatprep.subr.bf16.mxu0 %v255
      %275 = vmatpush1.bf16.msra.mxu0 %v254
      %276 = vmatprep.subr.bf16.mxu0 %v257
      %277 = vmatpush1.bf16.msra.mxu0 %v256
      %278 = vmatprep.subr.bf16.mxu0 %v259
      %279 = vmatpush1.bf16.msra.mxu0 %v258
      %280 = vmatprep.subr.bf16.mxu0 0
      %281 = vmatpush1.bf16.msra.mxu0 0
      %282 = vmatprep.subr.bf16.mxu0 0
      %283 = vmatpush1.bf16.msra.mxu0 0
      %284 = vmatprep.subr.bf16.mxu0 0
      %285 = vmatpush1.bf16.msra.mxu0 0
      %286 = vmatprep.subr.bf16.mxu0 0
      %287 = vmatpush1.bf16.msra.mxu0 0
      %288 = vmatprep.subr.bf16.mxu0 0
      %289 = vmatpush1.bf16.msra.mxu0 0
      %290 = vmatprep.subr.bf16.mxu0 0
      %291 = vmatpush1.bf16.msra.mxu0 0
      %292 = vmatprep.subr.bf16.mxu0 0
      %293 = vmatpush1.bf16.msra.mxu0 0
      %294 = vmatprep.subr.bf16.mxu0 0
      %295 = vmatpush1.bf16.msra.mxu0 0
      %296 = vmatprep.subr.bf16.mxu0 0
      %297 = vmatpush1.bf16.msra.mxu0 0
      %298 = vmatprep.subr.bf16.mxu0 0
      %299 = vmatpush1.bf16.msra.mxu0 0
      %300 = vmatprep.subr.bf16.mxu0 0
      %301 = vmatpush1.bf16.msra.mxu0 0
      %302 = vmatprep.subr.bf16.mxu0 0
      %303 = vmatpush1.bf16.msra.mxu0 0
      %304 = vmatprep.mubr.bf16.mxu0 0
      %305 = vmatmul.mubr.bf16.gmra.mrb[0].mxu0 %v270
      %v306 = vpop.f32.mrb[0].mxu0
      %v307 = vadd.f32 %v221, %v306
      %v308 = vpop.f32.mrb[0].mxu0
      %v309 = vadd.f32 %v225, %v308
      %v310 = vpop.f32.mrb[0].mxu0
      %v311 = vpop.f32.mrb[0].mxu0
      %312 = vdwg.mxu0
      %s313 = smul.u32 %s208, 2
      %s314 = smul.addr %s313, 2
      %s315 = scalar_lea.vmem [#allocation2], %s314
      %v316 = vld [vmem:[%s315] sm:$0xf]
      %s317 = smul.u32 %s214, 2
      %s318 = smul.addr %s317, 2
      %s319 = scalar_lea.vmem [#allocation2], %s318
      %v320 = vld [vmem:[%s319] sm:$0xf]
      %v321 = vsel %vm204, 1, 0
      %v322 = vsel %vm205, 1, 0
      %vm323 = vcmp.eq.s32.totalorder %v321, 1
      %vm324 = vcmp.eq.s32.totalorder %v322, 1
      %v327 = vunpack.c.l.s4 1983009808
      %v328 = vunpack.c.0.s8 %v327
      %v329 = vlaneseq
      %v330 = vshrl.u32 %v329, 7
      %v331 = vsub.s32 %v328, %v330
      %v332 = vrot.slane %v316, %v331
      %v333 = vcombine.high %v332, %v332
      %v338 = vunpack.c.l.s4 1983009808
      %v339 = vunpack.c.0.s8 %v338
      %v340 = vlaneseq
      %v341 = vshrl.u32 %v340, 7
      %v342 = vsub.s32 %v339, %v341
      %v343 = vrot.slane %v320, %v342
      %v344 = vcombine.high %v343, %v343
      %v347 = vsel %vm323, %v332, %v343
      %v348 = vsel %vm324, %v333, %v344
      %s349 = scalar_lea.vmem %s2, %s313
      %v350 = vld [vmem:[%s349] sm:$0x3]
      %s351 = scalar_lea.vmem %s2, %s317
      %v352 = vld [vmem:[%s351] sm:$0x3]
      %v353 = vsel %vm206, 1, 0
      %vm354 = vcmp.eq.s32.totalorder %v353, 1
      %356 = vset.pattern.permute.xlu0 0
      %357 = vperm.xlu0 %356, %v350
      %v358 = vpop.permute.xlu0 %357
      %361 = vset.pattern.permute.xlu0 0
      %362 = vperm.xlu0 %361, %v352
      %v363 = vpop.permute.xlu0 %362
      %v365 = vsel %vm354, %v358, %v363
      %v366 = vadd.f32 %v347, %v307
      %v367 = vxor.u32 %v366, 2147483648
      %v368 = vmul.f32 %v367, 1.442695
      %v369 = vpow.pop %v368
      %v370 = vadd.f32 %v369, 1.0
      %v371 = vrcp.pop %v370
      %v372 = vmul.f32 1.0, %v371
      %v373 = vmul.f32 %v372, %v309
      %v374 = vadd.f32 %v348, %v373
      %v375 = vtanh.pop %v374
      %v376 = vsub.f32 1.0, %v372
      %378 = vrot.lane.b32.xlu0 %v375, 64
      %v379 = vpop.permute.xlu0 %378
      %v381 = vmul.f32 %v376, %v379
      %383 = vrot.lane.b32.xlu0 %v215, 64
      %v384 = vpop.permute.xlu0 %383
      %v386 = vmul.f32 %v372, %v384
      %v387 = vadd.f32 %v381, %v386
      %389 = vrot.lane.b32.xlu0 %v387, 64
      %v390 = vpop.permute.xlu0 %389
      %v392 = vmul.f32 %v365, %v390
      %v393 = vsub.f32 1.0, %v365
      %v394 = vmul.f32 %v393, %v215
      %v395 = vadd.f32 %v392, %v394
      %396 = vst.msk [vmem:[#allocation3] sm:$0x3] %vm175, %v395
    $region45: #{sentiment_rnn_forward.3} parent=1 // loop_footer
      %s210 = sadd.s32 %s208, 1
    $region46: #{sentiment_rnn_forward.3} parent=1 // loop_footer_branch
      %207 = sbr.rel target = $region42
    $region47: #{sentiment_rnn_forward.3} parent=1 // loop_exit
      _
    %v397 = vld [vmem:[#allocation3] sm:$0x3]
    %v398 = vpack.c.bf16 %v397, %v397
    %v399 = vld [vmem:[%s7] sm:$0xf]
    %v400 = vld [vmem:[%s7 + $0x4] sm:$0xf]
    %v401 = vld [vmem:[%s7 + $0x8] sm:$0xf]
    %v402 = vld [vmem:[%s7 + $0xc] sm:$0xf]
    %v403 = vld [vmem:[%s7 + $0x10] sm:$0xf]
    %v404 = vld [vmem:[%s7 + $0x14] sm:$0xf]
    %v405 = vld [vmem:[%s7 + $0x18] sm:$0xf]
    %v406 = vld [vmem:[%s7 + $0x1c] sm:$0xf]
    %v407 = vld [vmem:[%s8] sm:$0x1]
    %v409 = vlaneseq
    %v410 = vshrl.u32 %v409, 7
    %v411 = vsub.s32 0, %v410
    %v412 = vrot.slane %v407, %v411
    %v422 = vunpack.c.l.b16 %v399
    %v423 = vunpack.c.l.b16 %v400
    %v424 = vunpack.c.l.b16 %v401
    %v425 = vunpack.c.l.b16 %v402
    %v426 = vunpack.c.l.b16 %v403
    %v427 = vunpack.c.l.b16 %v404
    %v428 = vunpack.c.l.b16 %v405
    %v429 = vunpack.c.l.b16 %v406
    %v430 = vpack.c.b16 %v423, %v422
    %v431 = vpack.c.b16 %v425, %v424
    %v432 = vpack.c.b16 %v427, %v426
    %v433 = vpack.c.b16 %v429, %v428
    %vm438 = vcmask 523264
    %v440 = vsel %vm438, %v398, 0
    %442 = vmatprep.subr.bf16.mxu0 0
    %443 = vmatpush1.bf16.msra.mxu0 %v430
    %444 = vmatprep.subr.bf16.mxu0 0
    %445 = vmatpush1.bf16.msra.mxu0 %v431
    %446 = vmatprep.subr.bf16.mxu0 0
    %447 = vmatpush1.bf16.msra.mxu0 %v432
    %448 = vmatprep.subr.bf16.mxu0 0
    %449 = vmatpush1.bf16.msra.mxu0 %v433
    %450 = vmatprep.subr.bf16.mxu0 0
    %451 = vmatpush1.bf16.msra.mxu0 0
    %452 = vmatprep.subr.bf16.mxu0 0
    %453 = vmatpush1.bf16.msra.mxu0 0
    %454 = vmatprep.subr.bf16.mxu0 0
    %455 = vmatpush1.bf16.msra.mxu0 0
    %456 = vmatprep.subr.bf16.mxu0 0
    %457 = vmatpush1.bf16.msra.mxu0 0
    %458 = vmatprep.subr.bf16.mxu0 0
    %459 = vmatpush1.bf16.msra.mxu0 0
    %460 = vmatprep.subr.bf16.mxu0 0
    %461 = vmatpush1.bf16.msra.mxu0 0
    %462 = vmatprep.subr.bf16.mxu0 0
    %463 = vmatpush1.bf16.msra.mxu0 0
    %464 = vmatprep.subr.bf16.mxu0 0
    %465 = vmatpush1.bf16.msra.mxu0 0
    %466 = vmatprep.subr.bf16.mxu0 0
    %467 = vmatpush1.bf16.msra.mxu0 0
    %468 = vmatprep.subr.bf16.mxu0 0
    %469 = vmatpush1.bf16.msra.mxu0 0
    %470 = vmatprep.subr.bf16.mxu0 0
    %471 = vmatpush1.bf16.msra.mxu0 0
    %472 = vmatprep.subr.bf16.mxu0 0
    %473 = vmatpush1.bf16.msra.mxu0 0
    %474 = vmatprep.mubr.bf16.mxu0 0
    %475 = vmatmul.mubr.bf16.gmra.mrb[0].mxu0 %v440
    %v476 = vpop.f32.mrb[0].mxu0
    %v477 = vadd.f32 %v412, %v476
    %v478 = vpop.f32.mrb[0].mxu0
    %v479 = vpop.f32.mrb[0].mxu0
    %v480 = vpop.f32.mrb[0].mxu0
    %481 = vdwg.mxu0
    %vm482 = vcmask 9216
    %483 = vst.msk [vmem:[#allocation6] sm:$0x3] %vm482, %v477
    // Predicated region
    $region48: #{sentiment_rnn_forward.3} parent=1 // pred_check
      _
    $region49: #{sentiment_rnn_forward.3} parent=1 // pred_check_branch
      %485 = sbr.rel (0) target = $region51
    $region50: #{sentiment_rnn_forward.3} parent=1 // pred_region
      %s487 = ssub.s32 32, 32
      %488 = vsyncadd [#allocation7], %s487
      %s490 = sshll.u32 [#allocation6], 4
      %s491 = int_to_ptr.vmem [resolvable:$true] %s490
      %493 = dma.vmem_to_hbm [thread:$0]  %s491, 32, %s9, [#allocation7]
    $region51: #{sentiment_rnn_forward.3} parent=1 // pred_fallthru
      _
    // Predicated region
    $region52: #{sentiment_rnn_forward.3} parent=1 // pred_check
      _
    $region53: #{sentiment_rnn_forward.3} parent=1 // pred_check_branch
      %495 = sbr.rel (0) target = $region55
    $region54: #{sentiment_rnn_forward.3} parent=1 // pred_region
      %496 = dma.done [#allocation7], 32
    $region55: #{sentiment_rnn_forward.3} parent=1 // pred_fallthru
      _
    %497 = vsyncpa [#allocation7], 1

</llo_original>
